<compile_context>
chip_gen: v7x
topology: tpu7x:2x2x1
jax: 0.10.0
libtpu: 0.0.40
codegen_flags: <defaults>
</compile_context>

<pallas_src>
import functools

import jax
import jax.numpy as jnp
from jax.experimental import pallas as pl
from jax.experimental.pallas import tpu as pltpu


_OUT_LANES = 128  # lane-dense output block width


def _round_up(n, m):
    return ((n + m - 1) // m) * m


def _w_offsets(Din_pad, H):
    """Row offsets of each section in the packed bf16 weight slab.

    Every section starts on a multiple of 16 rows so all static sublane
    slices are tile-aligned for bf16 (16,128) tiling.
    """
    o_wx = 0
    o_whh = _round_up(Din_pad, 16)
    o_refq = o_whh + _round_up(H, 16)
    o_wd1 = o_refq + _round_up(H, 16)
    total = o_wd1 + _round_up(H, 16)
    return o_wx, o_whh, o_refq, o_wd1, total


def critic_kernel(x_ref, w_ref, b_ref, out_ref, *, L, B, H, Din_pad):
    fourH = 4 * H
    o_wx, o_whh, o_refq, o_wd1, _ = _w_offsets(Din_pad, H)

    # ---- carve the two packed parameter slabs (static slices, no extra DMA) -
    wx = w_ref[o_wx:o_wx + Din_pad, 0:fourH]            # (Din_pad, 4H) bf16
    whh = w_ref[o_whh:o_whh + H, 0:fourH]               # (H, 4H)       bf16
    wrefq = w_ref[o_refq:o_refq + H, 0:2 * H]           # (H, 2H)       bf16
    wd1 = w_ref[o_wd1:o_wd1 + H, 0:H]                   # (H, H)        bf16

    b_x = b_ref[0:1, 0:fourH]                           # (1, 4H) f32
    vrow = b_ref[1:2, 0:H]                              # (1, H)
    bd1 = b_ref[2:3, 0:H]                               # (1, H)
    wd2row = b_ref[3:4, 0:H]                            # (1, H)
    bias = b_ref[4:5, 0:1]                              # (1, 1)  = b_d2 + b1

    # ---- Encoder: W_emb·W_ih folded host-side -> single x-gates matmul -----
    gates_x = (jnp.dot(x_ref[...], wx, preferred_element_type=jnp.float32)
               + b_x)                                    # (L*B, 4H) f32

    # ---- single-layer LSTM, carry kept in vregs (static unroll over L) -----
    h = jnp.zeros((B, H), jnp.float32)
    c = jnp.zeros((B, H), jnp.float32)
    hb = h.astype(jnp.bfloat16)
    hs = []
    for t in range(L):                                   # L is static
        gates = (gates_x[t * B:(t + 1) * B, :]           # aligned static slice
                 + jnp.dot(hb, whh, preferred_element_type=jnp.float32))
        sig = jax.nn.sigmoid(gates)     # one EUP pass over all 4H lanes
        tnh = jnp.tanh(gates)           # one EUP pass over all 4H lanes
        i_g = sig[:, 0:H]               # torch gate order: i, f, g, o
        f_g = sig[:, H:2 * H]
        g_g = tnh[:, 2 * H:3 * H]
        o_g = sig[:, 3 * H:4 * H]
        c = f_g * c + i_g * g_g
        h = o_g * jnp.tanh(c)
        hb = h.astype(jnp.bfloat16)     # feeds next recurrent matmul
        hs.append(h)

    # ---- Glimpse: merged [W_ref | W_q] projection in one matmul ------------
    enc2d = jnp.concatenate(hs, axis=0)                  # (L*B, H) f32
    eq = jnp.dot(enc2d.astype(jnp.bfloat16), wrefq,
                 preferred_element_type=jnp.float32)      # (L*B, 2H)
    q = eq[(L - 1) * B:L * B, H:2 * H]                    # (B, H) = h_L @ W_q

    score_cols = []
    for t in range(L):
        u_t = jnp.tanh(eq[t * B:(t + 1) * B, 0:H] + q)    # (B, H)
        # VPU multiply + lane reduce instead of a 1-column MXU matmul.
        score_cols.append(jnp.sum(u_t * vrow, axis=1, keepdims=True))
    scores = jnp.concatenate(score_cols, axis=1)          # (B, L)
    m = jnp.max(scores, axis=1, keepdims=True)
    ex = jnp.exp(scores - m)
    attn = ex * pl.reciprocal(jnp.sum(ex, axis=1, keepdims=True), approx=True)

    glimpse = jnp.zeros((B, H), jnp.float32)
    for t in range(L):                                    # L VPU FMAs
        glimpse = glimpse + attn[:, t:t + 1] * hs[t]

    # ---- Dense head: Linear -> ReLU -> Linear(.,1) + (b_d2 + b1) -----------
    h1 = jnp.maximum(
        jnp.dot(glimpse.astype(jnp.bfloat16), wd1,
                preferred_element_type=jnp.float32) + bd1, 0.0)   # (B, H)
    pred = jnp.sum(h1 * wd2row, axis=1, keepdims=True) + bias     # (B, 1)
    out_ref[...] = jnp.broadcast_to(pred, out_ref.shape)          # lane-dense


def _pack_params(params, Din_pad, H, lane_w):
    """Fold W_emb·W_ih and pack everything into 2 lane-dense slabs."""
    hp = jax.lax.Precision.HIGHEST
    W_x = jnp.dot(params["W_emb"], params["W_ih"], precision=hp)       # (Din,4H)
    b_x = jnp.dot(params["b_emb"], params["W_ih"], precision=hp) \
        + params["b_lstm"]                                             # (1,4H)
    W_refq = jnp.concatenate([params["W_ref"], params["W_q"]], axis=1)  # (H,2H)

    o_wx, o_whh, o_refq, o_wd1, total = _w_offsets(Din_pad, H)
    w_slab = jnp.zeros((total, lane_w), jnp.float32)
    w_slab = w_slab.at[o_wx:o_wx + W_x.shape[0], :4 * H].set(W_x)
    w_slab = w_slab.at[o_whh:o_whh + H, :4 * H].set(params["W_hh"])
    w_slab = w_slab.at[o_refq:o_refq + H, :2 * H].set(W_refq)
    w_slab = w_slab.at[o_wd1:o_wd1 + H, :H].set(params["W_d1"])
    w_slab = w_slab.astype(jnp.bfloat16)

    b_slab = jnp.zeros((8, lane_w), jnp.float32)
    b_slab = b_slab.at[0, :4 * H].set(b_x[0])
    b_slab = b_slab.at[1, :H].set(params["v"][:, 0])
    b_slab = b_slab.at[2, :H].set(params["b_d1"][0])
    b_slab = b_slab.at[3, :H].set(params["W_d2"][:, 0])
    b_slab = b_slab.at[4, 0].set(params["b_d2"][0, 0] + params["b1"][0, 0])
    return w_slab, b_slab


def critic_forward(x_bld, params):
    """x_bld: (B, L, Din) float32 (PyTorch-style batch-major). Returns (B, 1)."""
    B, L, Din = x_bld.shape
    H = params["W_hh"].shape[0]
    assert H % 8 == 0, "hidden_dim must be a multiple of 8"

    # Pad batch / feature dims so all VPU/MXU tiles are sublane/lane-dense.
    B_pad = max(8, _round_up(B, 8))
    Din_pad = max(8, _round_up(Din, 8))
    lane_w = max(128, _round_up(4 * H, 128))

    x_pad = jnp.pad(x_bld, ((0, B_pad - B), (0, 0), (0, Din_pad - Din)))
    # Time-major flatten: row index = t * B_pad + b.
    x_flat = jnp.transpose(x_pad, (1, 0, 2)).reshape(L * B_pad, Din_pad)
    x_flat = x_flat.astype(jnp.bfloat16)

    w_slab, b_slab = _pack_params(params, Din_pad, H, lane_w)

    kernel = functools.partial(critic_kernel, L=L, B=B_pad, H=H, Din_pad=Din_pad)
    out = pl.pallas_call(
        kernel,
        out_shape=jax.ShapeDtypeStruct((B_pad, _OUT_LANES), jnp.float32),
        in_specs=[pl.BlockSpec(memory_space=pltpu.MemorySpace.VMEM)] * 3,
        out_specs=pl.BlockSpec(memory_space=pltpu.MemorySpace.VMEM),
    )(x_flat, w_slab, b_slab)
    return out[:B, :1]


# ------------------------- pure-JAX reference ------------------------------
def critic_reference(x_bld, params):
    B, L, Din = x_bld.shape
    H = params["W_hh"].shape[0]
    emb = jnp.einsum("bld,de->ble", x_bld, params["W_emb"]) + params["b_emb"]

    def step(carry, x_t):
        h, c = carry
        gates = x_t @ params["W_ih"] + h @ params["W_hh"] + params["b_lstm"]
        i = jax.nn.sigmoid(gates[:, 0:H])
        f = jax.nn.sigmoid(gates[:, H:2 * H])
        g = jnp.tanh(gates[:, 2 * H:3 * H])
        o = jax.nn.sigmoid(gates[:, 3 * H:4 * H])
        c = f * c + i * g
        h = o * jnp.tanh(c)
        return (h, c), h

    h0 = jnp.zeros((B, H), jnp.float32)
    (hL, _), enc = jax.lax.scan(step, (h0, h0), jnp.transpose(emb, (1, 0, 2)))
    enc = jnp.transpose(enc, (1, 0, 2))                          # (B, L, H)
    q = hL @ params["W_q"]
    e = jnp.einsum("blh,hk->blk", enc, params["W_ref"])
    scores = (jnp.tanh(e + q[:, None, :]) @ params["v"])[..., 0]  # (B, L)
    attn = jax.nn.softmax(scores, axis=1)
    glimpse = jnp.sum(attn[:, :, None] * enc, axis=1)             # (B, H)
    h1 = jax.nn.relu(glimpse @ params["W_d1"] + params["b_d1"])
    return h1 @ params["W_d2"] + params["b_d2"] + params["b1"]


# ------------------------------ setup ---------------------------------------
def make_params(key, Din, E, H, max_length):
    ks = jax.random.split(key, 12)
    u = lambda k, shp: (0.1 * jax.random.normal(k, shp)).astype(jnp.float32)
    return {
        "W_emb": u(ks[0], (Din, E)),
        "b_emb": u(ks[1], (1, E)),
        "W_ih": u(ks[2], (E, 4 * H)),
        "W_hh": u(ks[3], (H, 4 * H)),
        "b_lstm": u(ks[4], (1, 4 * H)),
        "W_ref": u(ks[5], (H, H)),
        "W_q": u(ks[6], (H, H)),
        "v": u(ks[7], (H, 1)),
        "W_d1": u(ks[8], (H, H)),
        "b_d1": u(ks[9], (1, H)),
        "W_d2": u(ks[10], (H, 1)),
        "b_d2": u(ks[11], (1, 1)),
        "b1": jnp.full((1, 1), max_length / 2.0, jnp.float32),   # init_baseline
    }


if __name__ == "__main__":
    # config: batch_size=2, max_length=8, input_dimension=4, input_embed=16,
    #         hidden_dim=32
    B, L, Din, E, H = 2, 8, 4, 16, 32

    key = jax.random.PRNGKey(0)
    k_x, k_p = jax.random.split(key)
    x = jax.random.normal(k_x, (B, L, Din), jnp.float32)
    params = make_params(k_p, Din, E, H, max_length=L)

    out = jax.block_until_ready(critic_forward(x, params))
    ref = jax.block_until_ready(critic_reference(x, params))

    assert out.shape == (B, 1), out.shape
    assert jnp.allclose(out, ref, rtol=1e-3, atol=1e-3), (out, ref)
    print("KERNEL_OK")
</pallas_src>

<mosaic_0001>
module attributes {stable_mosaic.version = 11 : i64} {
  func.func @critic_kernel(%arg0: memref<64x8xbf16, #tpu.memory_space<vmem>>, %arg1: memref<112x128xbf16, #tpu.memory_space<vmem>>, %arg2: memref<8x128xf32, #tpu.memory_space<vmem>>, %arg3: memref<8x128xf32, #tpu.memory_space<vmem>>) attributes {dimension_semantics = [], scalar_prefetch = 0 : i64, scratch_operands = 0 : i64, tpu.core_type = #tpu.core_type<tc>} {
    %c0 = arith.constant 0 : index
    %c0_0 = arith.constant 0 : index
    %0 = vector.load %arg1[%c0, %c0_0] : memref<112x128xbf16, #tpu.memory_space<vmem>>, vector<8x128xbf16>
    %c16 = arith.constant 16 : index
    %c0_1 = arith.constant 0 : index
    %1 = vector.load %arg1[%c16, %c0_1] : memref<112x128xbf16, #tpu.memory_space<vmem>>, vector<32x128xbf16>
    %c48 = arith.constant 48 : index
    %c0_2 = arith.constant 0 : index
    %2 = vector.load %arg1[%c48, %c0_2] : memref<112x128xbf16, #tpu.memory_space<vmem>>, vector<32x64xbf16>
    %c80 = arith.constant 80 : index
    %c0_3 = arith.constant 0 : index
    %3 = vector.load %arg1[%c80, %c0_3] : memref<112x128xbf16, #tpu.memory_space<vmem>>, vector<32x32xbf16>
    %c0_4 = arith.constant 0 : index
    %c0_5 = arith.constant 0 : index
    %4 = vector.load %arg2[%c0_4, %c0_5] : memref<8x128xf32, #tpu.memory_space<vmem>>, vector<1x128xf32>
    %c1 = arith.constant 1 : index
    %c0_6 = arith.constant 0 : index
    %5 = vector.load %arg2[%c1, %c0_6] : memref<8x128xf32, #tpu.memory_space<vmem>>, vector<1x32xf32>
    %c2 = arith.constant 2 : index
    %c0_7 = arith.constant 0 : index
    %6 = vector.load %arg2[%c2, %c0_7] : memref<8x128xf32, #tpu.memory_space<vmem>>, vector<1x32xf32>
    %c3 = arith.constant 3 : index
    %c0_8 = arith.constant 0 : index
    %7 = vector.load %arg2[%c3, %c0_8] : memref<8x128xf32, #tpu.memory_space<vmem>>, vector<1x32xf32>
    %c4 = arith.constant 4 : index
    %c0_9 = arith.constant 0 : index
    %8 = vector.load %arg2[%c4, %c0_9] : memref<8x128xf32, #tpu.memory_space<vmem>>, vector<1x1xf32>
    %c0_10 = arith.constant 0 : index
    %c0_11 = arith.constant 0 : index
    %9 = vector.load %arg0[%c0_10, %c0_11] : memref<64x8xbf16, #tpu.memory_space<vmem>>, vector<64x8xbf16>
    %cst = arith.constant dense<0.000000e+00> : vector<64x128xf32>
    %10 = tpu.matmul %9, %0, %cst {dimension_numbers = #tpu.dot_dimension_numbers<[1], [0], [0], [1], [0, 0, 1, 1], [], []>} : vector<64x8xbf16>, vector<8x128xbf16>, vector<64x128xf32> -> vector<64x128xf32>
    %11 = vector.broadcast %4 : vector<1x128xf32> to vector<64x128xf32>
    %12 = arith.addf %10, %11 : vector<64x128xf32>
    %cst_12 = arith.constant 0.000000e+00 : f32
    %13 = vector.broadcast %cst_12 : f32 to vector<8x32xf32>
    %cst_13 = arith.constant 0.000000e+00 : f32
    %14 = vector.broadcast %cst_13 : f32 to vector<8x32xf32>
    %15 = arith.truncf %13 : vector<8x32xf32> to vector<8x32xbf16>
    %16 = vector.extract_strided_slice %12 {offsets = [0, 0], sizes = [8, 128], strides = [1, 1]} : vector<64x128xf32> to vector<8x128xf32>
    %cst_14 = arith.constant dense<0.000000e+00> : vector<8x128xf32>
    %17 = tpu.matmul %15, %1, %cst_14 {dimension_numbers = #tpu.dot_dimension_numbers<[1], [0], [0], [1], [0, 0, 1, 1], [], []>} : vector<8x32xbf16>, vector<32x128xbf16>, vector<8x128xf32> -> vector<8x128xf32>
    %18 = arith.addf %16, %17 : vector<8x128xf32>
    %19 = arith.negf %18 : vector<8x128xf32>
    %20 = math.exp %19 : vector<8x128xf32>
    %cst_15 = arith.constant 1.000000e+00 : f32
    %21 = vector.broadcast %cst_15 : f32 to vector<8x128xf32>
    %22 = arith.addf %21, %20 : vector<8x128xf32>
    %23 = arith.divf %21, %22 : vector<8x128xf32>
    %24 = math.tanh %18 : vector<8x128xf32>
    %25 = vector.extract_strided_slice %23 {offsets = [0, 0], sizes = [8, 32], strides = [1, 1]} : vector<8x128xf32> to vector<8x32xf32>
    %26 = vector.extract_strided_slice %23 {offsets = [0, 32], sizes = [8, 32], strides = [1, 1]} : vector<8x128xf32> to vector<8x32xf32>
    %27 = vector.extract_strided_slice %24 {offsets = [0, 64], sizes = [8, 32], strides = [1, 1]} : vector<8x128xf32> to vector<8x32xf32>
    %28 = vector.extract_strided_slice %23 {offsets = [0, 96], sizes = [8, 32], strides = [1, 1]} : vector<8x128xf32> to vector<8x32xf32>
    %29 = arith.mulf %26, %14 : vector<8x32xf32>
    %30 = arith.mulf %25, %27 : vector<8x32xf32>
    %31 = arith.addf %29, %30 : vector<8x32xf32>
    %32 = math.tanh %31 : vector<8x32xf32>
    %33 = arith.mulf %28, %32 : vector<8x32xf32>
    %34 = arith.truncf %33 : vector<8x32xf32> to vector<8x32xbf16>
    %35 = vector.extract_strided_slice %12 {offsets = [8, 0], sizes = [8, 128], strides = [1, 1]} : vector<64x128xf32> to vector<8x128xf32>
    %cst_16 = arith.constant dense<0.000000e+00> : vector<8x128xf32>
    %36 = tpu.matmul %34, %1, %cst_16 {dimension_numbers = #tpu.dot_dimension_numbers<[1], [0], [0], [1], [0, 0, 1, 1], [], []>} : vector<8x32xbf16>, vector<32x128xbf16>, vector<8x128xf32> -> vector<8x128xf32>
    %37 = arith.addf %35, %36 : vector<8x128xf32>
    %38 = arith.negf %37 : vector<8x128xf32>
    %39 = math.exp %38 : vector<8x128xf32>
    %cst_17 = arith.constant 1.000000e+00 : f32
    %40 = vector.broadcast %cst_17 : f32 to vector<8x128xf32>
    %41 = arith.addf %40, %39 : vector<8x128xf32>
    %42 = arith.divf %40, %41 : vector<8x128xf32>
    %43 = math.tanh %37 : vector<8x128xf32>
    %44 = vector.extract_strided_slice %42 {offsets = [0, 0], sizes = [8, 32], strides = [1, 1]} : vector<8x128xf32> to vector<8x32xf32>
    %45 = vector.extract_strided_slice %42 {offsets = [0, 32], sizes = [8, 32], strides = [1, 1]} : vector<8x128xf32> to vector<8x32xf32>
    %46 = vector.extract_strided_slice %43 {offsets = [0, 64], sizes = [8, 32], strides = [1, 1]} : vector<8x128xf32> to vector<8x32xf32>
    %47 = vector.extract_strided_slice %42 {offsets = [0, 96], sizes = [8, 32], strides = [1, 1]} : vector<8x128xf32> to vector<8x32xf32>
    %48 = arith.mulf %45, %31 : vector<8x32xf32>
    %49 = arith.mulf %44, %46 : vector<8x32xf32>
    %50 = arith.addf %48, %49 : vector<8x32xf32>
    %51 = math.tanh %50 : vector<8x32xf32>
    %52 = arith.mulf %47, %51 : vector<8x32xf32>
    %53 = arith.truncf %52 : vector<8x32xf32> to vector<8x32xbf16>
    %54 = vector.extract_strided_slice %12 {offsets = [16, 0], sizes = [8, 128], strides = [1, 1]} : vector<64x128xf32> to vector<8x128xf32>
    %cst_18 = arith.constant dense<0.000000e+00> : vector<8x128xf32>
    %55 = tpu.matmul %53, %1, %cst_18 {dimension_numbers = #tpu.dot_dimension_numbers<[1], [0], [0], [1], [0, 0, 1, 1], [], []>} : vector<8x32xbf16>, vector<32x128xbf16>, vector<8x128xf32> -> vector<8x128xf32>
    %56 = arith.addf %54, %55 : vector<8x128xf32>
    %57 = arith.negf %56 : vector<8x128xf32>
    %58 = math.exp %57 : vector<8x128xf32>
    %cst_19 = arith.constant 1.000000e+00 : f32
    %59 = vector.broadcast %cst_19 : f32 to vector<8x128xf32>
    %60 = arith.addf %59, %58 : vector<8x128xf32>
    %61 = arith.divf %59, %60 : vector<8x128xf32>
    %62 = math.tanh %56 : vector<8x128xf32>
    %63 = vector.extract_strided_slice %61 {offsets = [0, 0], sizes = [8, 32], strides = [1, 1]} : vector<8x128xf32> to vector<8x32xf32>
    %64 = vector.extract_strided_slice %61 {offsets = [0, 32], sizes = [8, 32], strides = [1, 1]} : vector<8x128xf32> to vector<8x32xf32>
    %65 = vector.extract_strided_slice %62 {offsets = [0, 64], sizes = [8, 32], strides = [1, 1]} : vector<8x128xf32> to vector<8x32xf32>
    %66 = vector.extract_strided_slice %61 {offsets = [0, 96], sizes = [8, 32], strides = [1, 1]} : vector<8x128xf32> to vector<8x32xf32>
    %67 = arith.mulf %64, %50 : vector<8x32xf32>
    %68 = arith.mulf %63, %65 : vector<8x32xf32>
    %69 = arith.addf %67, %68 : vector<8x32xf32>
    %70 = math.tanh %69 : vector<8x32xf32>
    %71 = arith.mulf %66, %70 : vector<8x32xf32>
    %72 = arith.truncf %71 : vector<8x32xf32> to vector<8x32xbf16>
    %73 = vector.extract_strided_slice %12 {offsets = [24, 0], sizes = [8, 128], strides = [1, 1]} : vector<64x128xf32> to vector<8x128xf32>
    %cst_20 = arith.constant dense<0.000000e+00> : vector<8x128xf32>
    %74 = tpu.matmul %72, %1, %cst_20 {dimension_numbers = #tpu.dot_dimension_numbers<[1], [0], [0], [1], [0, 0, 1, 1], [], []>} : vector<8x32xbf16>, vector<32x128xbf16>, vector<8x128xf32> -> vector<8x128xf32>
    %75 = arith.addf %73, %74 : vector<8x128xf32>
    %76 = arith.negf %75 : vector<8x128xf32>
    %77 = math.exp %76 : vector<8x128xf32>
    %cst_21 = arith.constant 1.000000e+00 : f32
    %78 = vector.broadcast %cst_21 : f32 to vector<8x128xf32>
    %79 = arith.addf %78, %77 : vector<8x128xf32>
    %80 = arith.divf %78, %79 : vector<8x128xf32>
    %81 = math.tanh %75 : vector<8x128xf32>
    %82 = vector.extract_strided_slice %80 {offsets = [0, 0], sizes = [8, 32], strides = [1, 1]} : vector<8x128xf32> to vector<8x32xf32>
    %83 = vector.extract_strided_slice %80 {offsets = [0, 32], sizes = [8, 32], strides = [1, 1]} : vector<8x128xf32> to vector<8x32xf32>
    %84 = vector.extract_strided_slice %81 {offsets = [0, 64], sizes = [8, 32], strides = [1, 1]} : vector<8x128xf32> to vector<8x32xf32>
    %85 = vector.extract_strided_slice %80 {offsets = [0, 96], sizes = [8, 32], strides = [1, 1]} : vector<8x128xf32> to vector<8x32xf32>
    %86 = arith.mulf %83, %69 : vector<8x32xf32>
    %87 = arith.mulf %82, %84 : vector<8x32xf32>
    %88 = arith.addf %86, %87 : vector<8x32xf32>
    %89 = math.tanh %88 : vector<8x32xf32>
    %90 = arith.mulf %85, %89 : vector<8x32xf32>
    %91 = arith.truncf %90 : vector<8x32xf32> to vector<8x32xbf16>
    %92 = vector.extract_strided_slice %12 {offsets = [32, 0], sizes = [8, 128], strides = [1, 1]} : vector<64x128xf32> to vector<8x128xf32>
    %cst_22 = arith.constant dense<0.000000e+00> : vector<8x128xf32>
    %93 = tpu.matmul %91, %1, %cst_22 {dimension_numbers = #tpu.dot_dimension_numbers<[1], [0], [0], [1], [0, 0, 1, 1], [], []>} : vector<8x32xbf16>, vector<32x128xbf16>, vector<8x128xf32> -> vector<8x128xf32>
    %94 = arith.addf %92, %93 : vector<8x128xf32>
    %95 = arith.negf %94 : vector<8x128xf32>
    %96 = math.exp %95 : vector<8x128xf32>
    %cst_23 = arith.constant 1.000000e+00 : f32
    %97 = vector.broadcast %cst_23 : f32 to vector<8x128xf32>
    %98 = arith.addf %97, %96 : vector<8x128xf32>
    %99 = arith.divf %97, %98 : vector<8x128xf32>
    %100 = math.tanh %94 : vector<8x128xf32>
    %101 = vector.extract_strided_slice %99 {offsets = [0, 0], sizes = [8, 32], strides = [1, 1]} : vector<8x128xf32> to vector<8x32xf32>
    %102 = vector.extract_strided_slice %99 {offsets = [0, 32], sizes = [8, 32], strides = [1, 1]} : vector<8x128xf32> to vector<8x32xf32>
    %103 = vector.extract_strided_slice %100 {offsets = [0, 64], sizes = [8, 32], strides = [1, 1]} : vector<8x128xf32> to vector<8x32xf32>
    %104 = vector.extract_strided_slice %99 {offsets = [0, 96], sizes = [8, 32], strides = [1, 1]} : vector<8x128xf32> to vector<8x32xf32>
    %105 = arith.mulf %102, %88 : vector<8x32xf32>
    %106 = arith.mulf %101, %103 : vector<8x32xf32>
    %107 = arith.addf %105, %106 : vector<8x32xf32>
    %108 = math.tanh %107 : vector<8x32xf32>
    %109 = arith.mulf %104, %108 : vector<8x32xf32>
    %110 = arith.truncf %109 : vector<8x32xf32> to vector<8x32xbf16>
    %111 = vector.extract_strided_slice %12 {offsets = [40, 0], sizes = [8, 128], strides = [1, 1]} : vector<64x128xf32> to vector<8x128xf32>
    %cst_24 = arith.constant dense<0.000000e+00> : vector<8x128xf32>
    %112 = tpu.matmul %110, %1, %cst_24 {dimension_numbers = #tpu.dot_dimension_numbers<[1], [0], [0], [1], [0, 0, 1, 1], [], []>} : vector<8x32xbf16>, vector<32x128xbf16>, vector<8x128xf32> -> vector<8x128xf32>
    %113 = arith.addf %111, %112 : vector<8x128xf32>
    %114 = arith.negf %113 : vector<8x128xf32>
    %115 = math.exp %114 : vector<8x128xf32>
    %cst_25 = arith.constant 1.000000e+00 : f32
    %116 = vector.broadcast %cst_25 : f32 to vector<8x128xf32>
    %117 = arith.addf %116, %115 : vector<8x128xf32>
    %118 = arith.divf %116, %117 : vector<8x128xf32>
    %119 = math.tanh %113 : vector<8x128xf32>
    %120 = vector.extract_strided_slice %118 {offsets = [0, 0], sizes = [8, 32], strides = [1, 1]} : vector<8x128xf32> to vector<8x32xf32>
    %121 = vector.extract_strided_slice %118 {offsets = [0, 32], sizes = [8, 32], strides = [1, 1]} : vector<8x128xf32> to vector<8x32xf32>
    %122 = vector.extract_strided_slice %119 {offsets = [0, 64], sizes = [8, 32], strides = [1, 1]} : vector<8x128xf32> to vector<8x32xf32>
    %123 = vector.extract_strided_slice %118 {offsets = [0, 96], sizes = [8, 32], strides = [1, 1]} : vector<8x128xf32> to vector<8x32xf32>
    %124 = arith.mulf %121, %107 : vector<8x32xf32>
    %125 = arith.mulf %120, %122 : vector<8x32xf32>
    %126 = arith.addf %124, %125 : vector<8x32xf32>
    %127 = math.tanh %126 : vector<8x32xf32>
    %128 = arith.mulf %123, %127 : vector<8x32xf32>
    %129 = arith.truncf %128 : vector<8x32xf32> to vector<8x32xbf16>
    %130 = vector.extract_strided_slice %12 {offsets = [48, 0], sizes = [8, 128], strides = [1, 1]} : vector<64x128xf32> to vector<8x128xf32>
    %cst_26 = arith.constant dense<0.000000e+00> : vector<8x128xf32>
    %131 = tpu.matmul %129, %1, %cst_26 {dimension_numbers = #tpu.dot_dimension_numbers<[1], [0], [0], [1], [0, 0, 1, 1], [], []>} : vector<8x32xbf16>, vector<32x128xbf16>, vector<8x128xf32> -> vector<8x128xf32>
    %132 = arith.addf %130, %131 : vector<8x128xf32>
    %133 = arith.negf %132 : vector<8x128xf32>
    %134 = math.exp %133 : vector<8x128xf32>
    %cst_27 = arith.constant 1.000000e+00 : f32
    %135 = vector.broadcast %cst_27 : f32 to vector<8x128xf32>
    %136 = arith.addf %135, %134 : vector<8x128xf32>
    %137 = arith.divf %135, %136 : vector<8x128xf32>
    %138 = math.tanh %132 : vector<8x128xf32>
    %139 = vector.extract_strided_slice %137 {offsets = [0, 0], sizes = [8, 32], strides = [1, 1]} : vector<8x128xf32> to vector<8x32xf32>
    %140 = vector.extract_strided_slice %137 {offsets = [0, 32], sizes = [8, 32], strides = [1, 1]} : vector<8x128xf32> to vector<8x32xf32>
    %141 = vector.extract_strided_slice %138 {offsets = [0, 64], sizes = [8, 32], strides = [1, 1]} : vector<8x128xf32> to vector<8x32xf32>
    %142 = vector.extract_strided_slice %137 {offsets = [0, 96], sizes = [8, 32], strides = [1, 1]} : vector<8x128xf32> to vector<8x32xf32>
    %143 = arith.mulf %140, %126 : vector<8x32xf32>
    %144 = arith.mulf %139, %141 : vector<8x32xf32>
    %145 = arith.addf %143, %144 : vector<8x32xf32>
    %146 = math.tanh %145 : vector<8x32xf32>
    %147 = arith.mulf %142, %146 : vector<8x32xf32>
    %148 = arith.truncf %147 : vector<8x32xf32> to vector<8x32xbf16>
    %149 = vector.extract_strided_slice %12 {offsets = [56, 0], sizes = [8, 128], strides = [1, 1]} : vector<64x128xf32> to vector<8x128xf32>
    %cst_28 = arith.constant dense<0.000000e+00> : vector<8x128xf32>
    %150 = tpu.matmul %148, %1, %cst_28 {dimension_numbers = #tpu.dot_dimension_numbers<[1], [0], [0], [1], [0, 0, 1, 1], [], []>} : vector<8x32xbf16>, vector<32x128xbf16>, vector<8x128xf32> -> vector<8x128xf32>
    %151 = arith.addf %149, %150 : vector<8x128xf32>
    %152 = arith.negf %151 : vector<8x128xf32>
    %153 = math.exp %152 : vector<8x128xf32>
    %cst_29 = arith.constant 1.000000e+00 : f32
    %154 = vector.broadcast %cst_29 : f32 to vector<8x128xf32>
    %155 = arith.addf %154, %153 : vector<8x128xf32>
    %156 = arith.divf %154, %155 : vector<8x128xf32>
    %157 = math.tanh %151 : vector<8x128xf32>
    %158 = vector.extract_strided_slice %156 {offsets = [0, 0], sizes = [8, 32], strides = [1, 1]} : vector<8x128xf32> to vector<8x32xf32>
    %159 = vector.extract_strided_slice %156 {offsets = [0, 32], sizes = [8, 32], strides = [1, 1]} : vector<8x128xf32> to vector<8x32xf32>
    %160 = vector.extract_strided_slice %157 {offsets = [0, 64], sizes = [8, 32], strides = [1, 1]} : vector<8x128xf32> to vector<8x32xf32>
    %161 = vector.extract_strided_slice %156 {offsets = [0, 96], sizes = [8, 32], strides = [1, 1]} : vector<8x128xf32> to vector<8x32xf32>
    %162 = arith.mulf %159, %145 : vector<8x32xf32>
    %163 = arith.mulf %158, %160 : vector<8x32xf32>
    %164 = arith.addf %162, %163 : vector<8x32xf32>
    %165 = math.tanh %164 : vector<8x32xf32>
    %166 = arith.mulf %161, %165 : vector<8x32xf32>
    %167 = tpu.concatenate %33, %52, %71, %90, %109, %128, %147, %166 in 0 : vector<8x32xf32>, vector<8x32xf32>, vector<8x32xf32>, vector<8x32xf32>, vector<8x32xf32>, vector<8x32xf32>, vector<8x32xf32>, vector<8x32xf32> -> vector<64x32xf32>
    %168 = arith.truncf %167 : vector<64x32xf32> to vector<64x32xbf16>
    %cst_30 = arith.constant dense<0.000000e+00> : vector<64x64xf32>
    %169 = tpu.matmul %168, %2, %cst_30 {dimension_numbers = #tpu.dot_dimension_numbers<[1], [0], [0], [1], [0, 0, 1, 1], [], []>} : vector<64x32xbf16>, vector<32x64xbf16>, vector<64x64xf32> -> vector<64x64xf32>
    %170 = vector.extract_strided_slice %169 {offsets = [56, 32], sizes = [8, 32], strides = [1, 1]} : vector<64x64xf32> to vector<8x32xf32>
    %171 = vector.extract_strided_slice %169 {offsets = [0, 0], sizes = [8, 32], strides = [1, 1]} : vector<64x64xf32> to vector<8x32xf32>
    %172 = arith.addf %171, %170 : vector<8x32xf32>
    %173 = math.tanh %172 : vector<8x32xf32>
    %174 = vector.broadcast %5 : vector<1x32xf32> to vector<8x32xf32>
    %175 = arith.mulf %173, %174 : vector<8x32xf32>
    %cst_31 = arith.constant dense<0.000000e+00> : vector<8xf32>
    %176 = vector.multi_reduction <add>, %175, %cst_31 [1] : vector<8x32xf32> to vector<8xf32>
    %177 = vector.shape_cast %176 : vector<8xf32> to vector<8x1xf32>
    %178 = vector.extract_strided_slice %169 {offsets = [8, 0], sizes = [8, 32], strides = [1, 1]} : vector<64x64xf32> to vector<8x32xf32>
    %179 = arith.addf %178, %170 : vector<8x32xf32>
    %180 = math.tanh %179 : vector<8x32xf32>
    %181 = vector.broadcast %5 : vector<1x32xf32> to vector<8x32xf32>
    %182 = arith.mulf %180, %181 : vector<8x32xf32>
    %cst_32 = arith.constant dense<0.000000e+00> : vector<8xf32>
    %183 = vector.multi_reduction <add>, %182, %cst_32 [1] : vector<8x32xf32> to vector<8xf32>
    %184 = vector.shape_cast %183 : vector<8xf32> to vector<8x1xf32>
    %185 = vector.extract_strided_slice %169 {offsets = [16, 0], sizes = [8, 32], strides = [1, 1]} : vector<64x64xf32> to vector<8x32xf32>
    %186 = arith.addf %185, %170 : vector<8x32xf32>
    %187 = math.tanh %186 : vector<8x32xf32>
    %188 = vector.broadcast %5 : vector<1x32xf32> to vector<8x32xf32>
    %189 = arith.mulf %187, %188 : vector<8x32xf32>
    %cst_33 = arith.constant dense<0.000000e+00> : vector<8xf32>
    %190 = vector.multi_reduction <add>, %189, %cst_33 [1] : vector<8x32xf32> to vector<8xf32>
    %191 = vector.shape_cast %190 : vector<8xf32> to vector<8x1xf32>
    %192 = vector.extract_strided_slice %169 {offsets = [24, 0], sizes = [8, 32], strides = [1, 1]} : vector<64x64xf32> to vector<8x32xf32>
    %193 = arith.addf %192, %170 : vector<8x32xf32>
    %194 = math.tanh %193 : vector<8x32xf32>
    %195 = vector.broadcast %5 : vector<1x32xf32> to vector<8x32xf32>
    %196 = arith.mulf %194, %195 : vector<8x32xf32>
    %cst_34 = arith.constant dense<0.000000e+00> : vector<8xf32>
    %197 = vector.multi_reduction <add>, %196, %cst_34 [1] : vector<8x32xf32> to vector<8xf32>
    %198 = vector.shape_cast %197 : vector<8xf32> to vector<8x1xf32>
    %199 = vector.extract_strided_slice %169 {offsets = [32, 0], sizes = [8, 32], strides = [1, 1]} : vector<64x64xf32> to vector<8x32xf32>
    %200 = arith.addf %199, %170 : vector<8x32xf32>
    %201 = math.tanh %200 : vector<8x32xf32>
    %202 = vector.broadcast %5 : vector<1x32xf32> to vector<8x32xf32>
    %203 = arith.mulf %201, %202 : vector<8x32xf32>
    %cst_35 = arith.constant dense<0.000000e+00> : vector<8xf32>
    %204 = vector.multi_reduction <add>, %203, %cst_35 [1] : vector<8x32xf32> to vector<8xf32>
    %205 = vector.shape_cast %204 : vector<8xf32> to vector<8x1xf32>
    %206 = vector.extract_strided_slice %169 {offsets = [40, 0], sizes = [8, 32], strides = [1, 1]} : vector<64x64xf32> to vector<8x32xf32>
    %207 = arith.addf %206, %170 : vector<8x32xf32>
    %208 = math.tanh %207 : vector<8x32xf32>
    %209 = vector.broadcast %5 : vector<1x32xf32> to vector<8x32xf32>
    %210 = arith.mulf %208, %209 : vector<8x32xf32>
    %cst_36 = arith.constant dense<0.000000e+00> : vector<8xf32>
    %211 = vector.multi_reduction <add>, %210, %cst_36 [1] : vector<8x32xf32> to vector<8xf32>
    %212 = vector.shape_cast %211 : vector<8xf32> to vector<8x1xf32>
    %213 = vector.extract_strided_slice %169 {offsets = [48, 0], sizes = [8, 32], strides = [1, 1]} : vector<64x64xf32> to vector<8x32xf32>
    %214 = arith.addf %213, %170 : vector<8x32xf32>
    %215 = math.tanh %214 : vector<8x32xf32>
    %216 = vector.broadcast %5 : vector<1x32xf32> to vector<8x32xf32>
    %217 = arith.mulf %215, %216 : vector<8x32xf32>
    %cst_37 = arith.constant dense<0.000000e+00> : vector<8xf32>
    %218 = vector.multi_reduction <add>, %217, %cst_37 [1] : vector<8x32xf32> to vector<8xf32>
    %219 = vector.shape_cast %218 : vector<8xf32> to vector<8x1xf32>
    %220 = vector.extract_strided_slice %169 {offsets = [56, 0], sizes = [8, 32], strides = [1, 1]} : vector<64x64xf32> to vector<8x32xf32>
    %221 = arith.addf %220, %170 : vector<8x32xf32>
    %222 = math.tanh %221 : vector<8x32xf32>
    %223 = vector.broadcast %5 : vector<1x32xf32> to vector<8x32xf32>
    %224 = arith.mulf %222, %223 : vector<8x32xf32>
    %cst_38 = arith.constant dense<0.000000e+00> : vector<8xf32>
    %225 = vector.multi_reduction <add>, %224, %cst_38 [1] : vector<8x32xf32> to vector<8xf32>
    %226 = vector.shape_cast %225 : vector<8xf32> to vector<8x1xf32>
    %227 = tpu.concatenate %177, %184, %191, %198, %205, %212, %219, %226 in 1 : vector<8x1xf32>, vector<8x1xf32>, vector<8x1xf32>, vector<8x1xf32>, vector<8x1xf32>, vector<8x1xf32>, vector<8x1xf32>, vector<8x1xf32> -> vector<8x8xf32>
    %cst_39 = arith.constant dense<0xFF800000> : vector<8xf32>
    %228 = vector.multi_reduction <maximumf>, %227, %cst_39 [1] : vector<8x8xf32> to vector<8xf32>
    %229 = vector.shape_cast %228 : vector<8xf32> to vector<8x1xf32>
    %230 = vector.broadcast %229 : vector<8x1xf32> to vector<8x8xf32>
    %231 = arith.subf %227, %230 : vector<8x8xf32>
    %232 = math.exp %231 : vector<8x8xf32>
    %cst_40 = arith.constant dense<0.000000e+00> : vector<8xf32>
    %233 = vector.multi_reduction <add>, %232, %cst_40 [1] : vector<8x8xf32> to vector<8xf32>
    %234 = vector.shape_cast %233 : vector<8xf32> to vector<8x1xf32>
    %235 = tpu.reciprocal %234 {approx = true} : vector<8x1xf32> -> vector<8x1xf32>
    %236 = vector.broadcast %235 : vector<8x1xf32> to vector<8x8xf32>
    %237 = arith.mulf %232, %236 : vector<8x8xf32>
    %cst_41 = arith.constant 0.000000e+00 : f32
    %238 = vector.broadcast %cst_41 : f32 to vector<8x32xf32>
    %239 = vector.extract_strided_slice %237 {offsets = [0, 0], sizes = [8, 1], strides = [1, 1]} : vector<8x8xf32> to vector<8x1xf32>
    %240 = vector.broadcast %239 : vector<8x1xf32> to vector<8x32xf32>
    %241 = arith.mulf %240, %33 : vector<8x32xf32>
    %242 = arith.addf %238, %241 : vector<8x32xf32>
    %243 = vector.extract_strided_slice %237 {offsets = [0, 1], sizes = [8, 1], strides = [1, 1]} : vector<8x8xf32> to vector<8x1xf32>
    %244 = vector.broadcast %243 : vector<8x1xf32> to vector<8x32xf32>
    %245 = arith.mulf %244, %52 : vector<8x32xf32>
    %246 = arith.addf %242, %245 : vector<8x32xf32>
    %247 = vector.extract_strided_slice %237 {offsets = [0, 2], sizes = [8, 1], strides = [1, 1]} : vector<8x8xf32> to vector<8x1xf32>
    %248 = vector.broadcast %247 : vector<8x1xf32> to vector<8x32xf32>
    %249 = arith.mulf %248, %71 : vector<8x32xf32>
    %250 = arith.addf %246, %249 : vector<8x32xf32>
    %251 = vector.extract_strided_slice %237 {offsets = [0, 3], sizes = [8, 1], strides = [1, 1]} : vector<8x8xf32> to vector<8x1xf32>
    %252 = vector.broadcast %251 : vector<8x1xf32> to vector<8x32xf32>
    %253 = arith.mulf %252, %90 : vector<8x32xf32>
    %254 = arith.addf %250, %253 : vector<8x32xf32>
    %255 = vector.extract_strided_slice %237 {offsets = [0, 4], sizes = [8, 1], strides = [1, 1]} : vector<8x8xf32> to vector<8x1xf32>
    %256 = vector.broadcast %255 : vector<8x1xf32> to vector<8x32xf32>
    %257 = arith.mulf %256, %109 : vector<8x32xf32>
    %258 = arith.addf %254, %257 : vector<8x32xf32>
    %259 = vector.extract_strided_slice %237 {offsets = [0, 5], sizes = [8, 1], strides = [1, 1]} : vector<8x8xf32> to vector<8x1xf32>
    %260 = vector.broadcast %259 : vector<8x1xf32> to vector<8x32xf32>
    %261 = arith.mulf %260, %128 : vector<8x32xf32>
    %262 = arith.addf %258, %261 : vector<8x32xf32>
    %263 = vector.extract_strided_slice %237 {offsets = [0, 6], sizes = [8, 1], strides = [1, 1]} : vector<8x8xf32> to vector<8x1xf32>
    %264 = vector.broadcast %263 : vector<8x1xf32> to vector<8x32xf32>
    %265 = arith.mulf %264, %147 : vector<8x32xf32>
    %266 = arith.addf %262, %265 : vector<8x32xf32>
    %267 = vector.extract_strided_slice %237 {offsets = [0, 7], sizes = [8, 1], strides = [1, 1]} : vector<8x8xf32> to vector<8x1xf32>
    %268 = vector.broadcast %267 : vector<8x1xf32> to vector<8x32xf32>
    %269 = arith.mulf %268, %166 : vector<8x32xf32>
    %270 = arith.addf %266, %269 : vector<8x32xf32>
    %271 = arith.truncf %270 : vector<8x32xf32> to vector<8x32xbf16>
    %cst_42 = arith.constant dense<0.000000e+00> : vector<8x32xf32>
    %272 = tpu.matmul %271, %3, %cst_42 {dimension_numbers = #tpu.dot_dimension_numbers<[1], [0], [0], [1], [0, 0, 1, 1], [], []>} : vector<8x32xbf16>, vector<32x32xbf16>, vector<8x32xf32> -> vector<8x32xf32>
    %273 = vector.broadcast %6 : vector<1x32xf32> to vector<8x32xf32>
    %274 = arith.addf %272, %273 : vector<8x32xf32>
    %cst_43 = arith.constant 0.000000e+00 : f32
    %275 = vector.broadcast %cst_43 : f32 to vector<8x32xf32>
    %276 = arith.maximumf %274, %275 : vector<8x32xf32>
    %277 = vector.broadcast %7 : vector<1x32xf32> to vector<8x32xf32>
    %278 = arith.mulf %276, %277 : vector<8x32xf32>
    %cst_44 = arith.constant dense<0.000000e+00> : vector<8xf32>
    %279 = vector.multi_reduction <add>, %278, %cst_44 [1] : vector<8x32xf32> to vector<8xf32>
    %280 = vector.shape_cast %279 : vector<8xf32> to vector<8x1xf32>
    %281 = vector.broadcast %8 : vector<1x1xf32> to vector<8x1xf32>
    %282 = arith.addf %280, %281 : vector<8x1xf32>
    %283 = vector.shape_cast %282 : vector<8x1xf32> to vector<8x1xf32>
    %284 = vector.broadcast %283 : vector<8x1xf32> to vector<8x128xf32>
    %c0_45 = arith.constant 0 : index
    %c0_46 = arith.constant 0 : index
    %285 = vector.load %arg3[%c0_45, %c0_46] : memref<8x128xf32, #tpu.memory_space<vmem>>, vector<8x128xf32>
    tpu.vector_store %arg3[%c0_45, %c0_46], %284 {strides = array<i32>} : memref<8x128xf32, #tpu.memory_space<vmem>>, vector<8x128xf32>,
    return
  }
}

</mosaic_0001>

<llo_original>
// kernel: tpu_custom_call.1
$region0: #{tpu_custom_call.1}
  #allocation0 [shape = 'u32[]', space=smem, size = 0x4, offset = 0x4, fixed_abs, tag = 'smem constant byte address 0x4 - core index']
  #allocation1 [shape = 'u32[144,128]{1,0:T(1,128)}', space=vmem, size = 0x12000, scoped, tag = 'internal scratch']
  %s0 = inlined_call_operand.vmem [shape: bf16[64,8], index: 0, kind: input, shape index: {}]
  %s1 = inlined_call_operand.hbm [shape: bf16[112,128], index: 1, kind: input, shape index: {}]
  %s2 = inlined_call_operand.vmem [shape: f32[8,128], index: 2, kind: input, shape index: {}]
  %s3 = inlined_call_operand.hbm [shape: f32[8,128], index: 3, kind: output, shape index: {}]
  %s4 = sld [smem:[#allocation0]]
  $region26: #{tpu_custom_call.1} parent=0
    _
  %s6 = ssub.s32 1, %s4
  %s7 = scalar_select 0, %s6, %s4
  $region1: #{tpu_custom_call.1} parent=0
    #allocation2 [shape = 'u8[28672]{0}', space=vmem, size = 0x7000, scoped, tag = 'input window, operand 1, single buffered']
    #allocation3 [shape = 's32[1]{0}', space=sflag, size = 0x4, scoped, tag = 'scoped memory for tpu_custom_call.1']
    #allocation4 [shape = 's32[1]{0}', space=sflag, size = 0x4, scoped, tag = 'scoped memory for tpu_custom_call.1']
    #allocation5 [shape = 'u8[4096]{0}', space=vmem, size = 0x1000, scoped, tag = 'output window, operand 0, single buffered']
    %8 = vsyncpa [#allocation3], 0
    %9 = vsyncpa [#allocation4], 0
    // Predicated region
    $region2: #{tpu_custom_call.1} parent=1 // pred_check
      _
    $region3: #{tpu_custom_call.1} parent=1 // pred_check_branch
      %11 = sbr.rel (0) target = $region5
    $region4: #{tpu_custom_call.1} parent=1 // pred_region
      _
    $region5: #{tpu_custom_call.1} parent=1 // pred_fallthru
      _
    // Predicated region
    $region6: #{tpu_custom_call.1} parent=1 // pred_check
      _
    $region7: #{tpu_custom_call.1} parent=1 // pred_check_branch
      %13 = sbr.rel (0) target = $region9
    $region8: #{tpu_custom_call.1} parent=1 // pred_region
      %s15 = ssub.s32 896, 896
      %16 = vsyncadd [#allocation3], %s15
      %s17 = sshll.u32 [#allocation2], 4
      %s18 = int_to_ptr.vmem [resolvable:$true] %s17
      %23 = dma.hbm_to_vmem [thread:$0]  %s1, 896, %s18, [#allocation3], 64, 64, 4
    $region9: #{tpu_custom_call.1} parent=1 // pred_fallthru
      _
    // Predicated region
    $region10: #{tpu_custom_call.1} parent=1 // pred_check
      _
    $region11: #{tpu_custom_call.1} parent=1 // pred_check_branch
      %25 = sbr.rel (0) target = $region13
    $region12: #{tpu_custom_call.1} parent=1 // pred_region
      _
    $region13: #{tpu_custom_call.1} parent=1 // pred_fallthru
      _
    // Predicated region
    $region14: #{tpu_custom_call.1} parent=1 // pred_check
      _
    $region15: #{tpu_custom_call.1} parent=1 // pred_check_branch
      %27 = sbr.rel (0) target = $region17
    $region16: #{tpu_custom_call.1} parent=1 // pred_region
      %28 = dma.done [#allocation3], 896
    $region17: #{tpu_custom_call.1} parent=1 // pred_fallthru
      _
    %v30 = vld [vmem:[#allocation2] sm:$0xf]
    %v31 = vld [vmem:[#allocation2 + $0x8] sm:$0xf]
    %v32 = vld [vmem:[#allocation2 + $0xc] sm:$0xf]
    %v33 = vld [vmem:[#allocation2 + $0x10] sm:$0xf]
    %v34 = vld [vmem:[#allocation2 + $0x14] sm:$0xf]
    %v35 = vld [vmem:[#allocation2 + $0x18] sm:$0xf]
    %v36 = vld [vmem:[#allocation2 + $0x1c] sm:$0xf]
    %v37 = vld [vmem:[#allocation2 + $0x20] sm:$0xf]
    %v38 = vld [vmem:[#allocation2 + $0x24] sm:$0xf]
    %v39 = vld [vmem:[#allocation2 + $0x28] sm:$0xf]
    %v40 = vld [vmem:[#allocation2 + $0x2c] sm:$0xf]
    %v41 = vld [vmem:[#allocation2 + $0x30] sm:$0xf]
    %v42 = vld [vmem:[#allocation2 + $0x34] sm:$0xf]
    %v43 = vld [vmem:[%s2] sm:$0x1]
    %v44 = vld [vmem:[%s2 + $0x1] sm:$0x1]
    %v45 = vld [vmem:[%s2 + $0x2] sm:$0x1]
    %v46 = vld [vmem:[%s2 + $0x3] sm:$0x1]
    %v47 = vld [vmem:[%s2 + $0x4] sm:$0x1]
    %v48 = vld [vmem:[%s0] sm:$0xf]
    %v49 = vld [vmem:[%s0 + $0x4] sm:$0xf]
    %v50 = vld [vmem:[%s0 + $0x8] sm:$0xf]
    %v51 = vld [vmem:[%s0 + $0xc] sm:$0xf]
    %v52 = vld [vmem:[%s0 + $0x10] sm:$0xf]
    %v53 = vld [vmem:[%s0 + $0x14] sm:$0xf]
    %v54 = vld [vmem:[%s0 + $0x18] sm:$0xf]
    %v55 = vld [vmem:[%s0 + $0x1c] sm:$0xf]
    %v56 = vlaneseq
    %v57 = vshrl.u32 %v56, 7
    %v58 = vsub.s32 0, %v57
    %v59 = vrot.slane %v43, %v58
    %v68 = vunpack.c.l.b16 %v48
    %v69 = vunpack.c.l.b16 %v49
    %v70 = vunpack.c.l.b16 %v50
    %v71 = vunpack.c.l.b16 %v51
    %v72 = vunpack.c.l.b16 %v52
    %v73 = vunpack.c.l.b16 %v53
    %v74 = vunpack.c.l.b16 %v54
    %v75 = vunpack.c.l.b16 %v55
    %v76 = vpack.c.b16 %v69, %v68
    %v77 = vpack.c.b16 %v71, %v70
    %v78 = vpack.c.b16 %v73, %v72
    %v79 = vpack.c.b16 %v75, %v74
    %vm80 = vcmask 64512
    %v82 = vsel %vm80, %v76, 0
    %v85 = vsel %vm80, %v77, 0
    %v88 = vsel %vm80, %v78, 0
    %v91 = vsel %vm80, %v79, 0
    %vm93 = vcmask 1043456
    %v95 = vsel %vm93, %v30, 0
    %97 = vmatprep.subr.bf16.mxu0 0
    %98 = vmatpush1.bf16.msra.mxu0 %v95
    %99 = vmatprep.subr.bf16.mxu0 0
    %100 = vmatpush1.bf16.msra.mxu0 0
    %101 = vmatprep.subr.bf16.mxu0 0
    %102 = vmatpush1.bf16.msra.mxu0 0
    %103 = vmatprep.subr.bf16.mxu0 0
    %104 = vmatpush1.bf16.msra.mxu0 0
    %105 = vmatprep.subr.bf16.mxu0 0
    %106 = vmatpush1.bf16.msra.mxu0 0
    %107 = vmatprep.subr.bf16.mxu0 0
    %108 = vmatpush1.bf16.msra.mxu0 0
    %109 = vmatprep.subr.bf16.mxu0 0
    %110 = vmatpush1.bf16.msra.mxu0 0
    %111 = vmatprep.subr.bf16.mxu0 0
    %112 = vmatpush1.bf16.msra.mxu0 0
    %113 = vmatprep.subr.bf16.mxu0 0
    %114 = vmatpush1.bf16.msra.mxu0 0
    %115 = vmatprep.subr.bf16.mxu0 0
    %116 = vmatpush1.bf16.msra.mxu0 0
    %117 = vmatprep.subr.bf16.mxu0 0
    %118 = vmatpush1.bf16.msra.mxu0 0
    %119 = vmatprep.subr.bf16.mxu0 0
    %120 = vmatpush1.bf16.msra.mxu0 0
    %121 = vmatprep.subr.bf16.mxu0 0
    %122 = vmatpush1.bf16.msra.mxu0 0
    %123 = vmatprep.subr.bf16.mxu0 0
    %124 = vmatpush1.bf16.msra.mxu0 0
    %125 = vmatprep.subr.bf16.mxu0 0
    %126 = vmatpush1.bf16.msra.mxu0 0
    %127 = vmatprep.subr.bf16.mxu0 0
    %128 = vmatpush1.bf16.msra.mxu0 0
    %129 = vmatprep.mubr.bf16.mxu0 0
    %130 = vmatmul.mubr.bf16.gmra.mrb[0].mxu0 %v82
    %v131 = vpop.f32.mrb[0].mxu0
    %v132 = vadd.f32 %v59, %v131
    %v133 = vpop.f32.mrb[0].mxu0
    %v134 = vpop.f32.mrb[0].mxu0
    %v135 = vadd.f32 %v59, %v134
    %v136 = vpop.f32.mrb[0].mxu0
    %137 = vmatprep.mubr.bf16.mxu0 0
    %138 = vmatmul.mubr.bf16.gmra.mrb[0].mxu0 %v85
    %v139 = vpop.f32.mrb[0].mxu0
    %v140 = vadd.f32 %v59, %v139
    %v141 = vpop.f32.mrb[0].mxu0
    %v142 = vpop.f32.mrb[0].mxu0
    %v143 = vadd.f32 %v59, %v142
    %v144 = vpop.f32.mrb[0].mxu0
    %145 = vmatprep.mubr.bf16.mxu0 0
    %146 = vmatmul.mubr.bf16.gmra.mrb[0].mxu0 %v88
    %v147 = vpop.f32.mrb[0].mxu0
    %v148 = vadd.f32 %v59, %v147
    %v149 = vpop.f32.mrb[0].mxu0
    %v150 = vpop.f32.mrb[0].mxu0
    %v151 = vadd.f32 %v59, %v150
    %v152 = vpop.f32.mrb[0].mxu0
    %153 = vmatprep.mubr.bf16.mxu0 0
    %154 = vmatmul.mubr.bf16.gmra.mrb[0].mxu0 %v91
    %v155 = vpop.f32.mrb[0].mxu0
    %v156 = vadd.f32 %v59, %v155
    %v157 = vpop.f32.mrb[0].mxu0
    %v158 = vpop.f32.mrb[0].mxu0
    %v159 = vadd.f32 %v59, %v158
    %v160 = vpop.f32.mrb[0].mxu0
    %161 = vdwg.mxu0
    %v166 = vunpack.c.l.b16 %v31
    %v167 = vunpack.c.l.b16 %v32
    %v168 = vunpack.c.l.b16 %v33
    %v169 = vunpack.c.l.b16 %v34
    %v170 = vpack.c.b16 %v167, %v166
    %v171 = vpack.c.b16 %v169, %v168
    %vm174 = vcmask 261120
    %v176 = vsel %vm174, 0, 0
    %178 = vmatprep.subr.bf16.mxu0 0
    %179 = vmatpush1.bf16.msra.mxu0 %v170
    %180 = vmatprep.subr.bf16.mxu0 0
    %181 = vmatpush1.bf16.msra.mxu0 %v171
    %182 = vmatprep.subr.bf16.mxu0 0
    %183 = vmatpush1.bf16.msra.mxu0 0
    %184 = vmatprep.subr.bf16.mxu0 0
    %185 = vmatpush1.bf16.msra.mxu0 0
    %186 = vmatprep.subr.bf16.mxu0 0
    %187 = vmatpush1.bf16.msra.mxu0 0
    %188 = vmatprep.subr.bf16.mxu0 0
    %189 = vmatpush1.bf16.msra.mxu0 0
    %190 = vmatprep.subr.bf16.mxu0 0
    %191 = vmatpush1.bf16.msra.mxu0 0
    %192 = vmatprep.subr.bf16.mxu0 0
    %193 = vmatpush1.bf16.msra.mxu0 0
    %194 = vmatprep.subr.bf16.mxu0 0
    %195 = vmatpush1.bf16.msra.mxu0 0
    %196 = vmatprep.subr.bf16.mxu0 0
    %197 = vmatpush1.bf16.msra.mxu0 0
    %198 = vmatprep.subr.bf16.mxu0 0
    %199 = vmatpush1.bf16.msra.mxu0 0
    %200 = vmatprep.subr.bf16.mxu0 0
    %201 = vmatpush1.bf16.msra.mxu0 0
    %202 = vmatprep.subr.bf16.mxu0 0
    %203 = vmatpush1.bf16.msra.mxu0 0
    %204 = vmatprep.subr.bf16.mxu0 0
    %205 = vmatpush1.bf16.msra.mxu0 0
    %206 = vmatprep.subr.bf16.mxu0 0
    %207 = vmatpush1.bf16.msra.mxu0 0
    %208 = vmatprep.subr.bf16.mxu0 0
    %209 = vmatpush1.bf16.msra.mxu0 0
    %210 = vmatprep.mubr.bf16.mxu0 0
    %211 = vmatmul.mubr.bf16.gmra.mrb[0].mxu0 %v176
    %v212 = vpop.f32.mrb[0].mxu0
    %v213 = vadd.f32 0.0, %v212
    %v214 = vpop.f32.mrb[0].mxu0
    %v215 = vpop.f32.mrb[0].mxu0
    %v216 = vpop.f32.mrb[0].mxu0
    %217 = vdwg.mxu0
    %v218 = vadd.f32 %v132, %v213
    %v219 = vxor.u32 %v218, 2147483648
    %v220 = vmul.f32 %v219, 1.442695
    %v221 = vpow.pop %v220
    %v222 = vadd.f32 %v221, 1.0
    %v223 = vrcp.pop %v222
    %v224 = vmul.f32 1.0, %v223
    %v225 = vtanh.pop %v218
    %v226 = vmul.f32 %v224, 0.0
    %228 = vrot.lane.b32.xlu0 %v225, 64
    %v229 = vpop.permute.xlu0 %228
    %v231 = vmul.f32 %v224, %v229
    %233 = vrot.lane.b32.xlu0 %v231, 32
    %v234 = vpop.permute.xlu0 %233
    %v236 = vadd.f32 %v226, %v234
    %v237 = vtanh.pop %v236
    %239 = vrot.lane.b32.xlu0 %v237, 64
    %v240 = vpop.permute.xlu0 %239
    %v242 = vmul.f32 %v224, %v240
    %v243 = vpack.c.bf16 %v242, %v242
    %245 = vrot.lane.b32.xlu0 %v243, 32
    %v246 = vpop.permute.xlu0 %245
    %v248 = vsel %vm174, %v246, 0
    %250 = vmatprep.subr.bf16.mxu0 0
    %251 = vmatpush1.bf16.msra.mxu0 %v170
    %252 = vmatprep.subr.bf16.mxu0 0
    %253 = vmatpush1.bf16.msra.mxu0 %v171
    %254 = vmatprep.subr.bf16.mxu0 0
    %255 = vmatpush1.bf16.msra.mxu0 0
    %256 = vmatprep.subr.bf16.mxu0 0
    %257 = vmatpush1.bf16.msra.mxu0 0
    %258 = vmatprep.subr.bf16.mxu0 0
    %259 = vmatpush1.bf16.msra.mxu0 0
    %260 = vmatprep.subr.bf16.mxu0 0
    %261 = vmatpush1.bf16.msra.mxu0 0
    %262 = vmatprep.subr.bf16.mxu0 0
    %263 = vmatpush1.bf16.msra.mxu0 0
    %264 = vmatprep.subr.bf16.mxu0 0
    %265 = vmatpush1.bf16.msra.mxu0 0
    %266 = vmatprep.subr.bf16.mxu0 0
    %267 = vmatpush1.bf16.msra.mxu0 0
    %268 = vmatprep.subr.bf16.mxu0 0
    %269 = vmatpush1.bf16.msra.mxu0 0
    %270 = vmatprep.subr.bf16.mxu0 0
    %271 = vmatpush1.bf16.msra.mxu0 0
    %272 = vmatprep.subr.bf16.mxu0 0
    %273 = vmatpush1.bf16.msra.mxu0 0
    %274 = vmatprep.subr.bf16.mxu0 0
    %275 = vmatpush1.bf16.msra.mxu0 0
    %276 = vmatprep.subr.bf16.mxu0 0
    %277 = vmatpush1.bf16.msra.mxu0 0
    %278 = vmatprep.subr.bf16.mxu0 0
    %279 = vmatpush1.bf16.msra.mxu0 0
    %280 = vmatprep.subr.bf16.mxu0 0
    %281 = vmatpush1.bf16.msra.mxu0 0
    %282 = vmatprep.mubr.bf16.mxu0 0
    %283 = vmatmul.mubr.bf16.gmra.mrb[0].mxu0 %v248
    %v284 = vpop.f32.mrb[0].mxu0
    %v285 = vadd.f32 0.0, %v284
    %v286 = vpop.f32.mrb[0].mxu0
    %v287 = vpop.f32.mrb[0].mxu0
    %v288 = vpop.f32.mrb[0].mxu0
    %289 = vdwg.mxu0
    %v290 = vadd.f32 %v135, %v285
    %v291 = vxor.u32 %v290, 2147483648
    %v292 = vmul.f32 %v291, 1.442695
    %v293 = vpow.pop %v292
    %v294 = vadd.f32 %v293, 1.0
    %v295 = vrcp.pop %v294
    %v296 = vmul.f32 1.0, %v295
    %v297 = vtanh.pop %v290
    %v298 = vmul.f32 %v296, %v236
    %300 = vrot.lane.b32.xlu0 %v297, 64
    %v301 = vpop.permute.xlu0 %300
    %v303 = vmul.f32 %v296, %v301
    %305 = vrot.lane.b32.xlu0 %v303, 32
    %v306 = vpop.permute.xlu0 %305
    %v308 = vadd.f32 %v298, %v306
    %v309 = vtanh.pop %v308
    %311 = vrot.lane.b32.xlu0 %v309, 64
    %v312 = vpop.permute.xlu0 %311
    %v314 = vmul.f32 %v296, %v312
    %v315 = vpack.c.bf16 %v314, %v314
    %317 = vrot.lane.b32.xlu0 %v315, 32
    %v318 = vpop.permute.xlu0 %317
    %v320 = vsel %vm174, %v318, 0
    %322 = vmatprep.subr.bf16.mxu0 0
    %323 = vmatpush1.bf16.msra.mxu0 %v170
    %324 = vmatprep.subr.bf16.mxu0 0
    %325 = vmatpush1.bf16.msra.mxu0 %v171
    %326 = vmatprep.subr.bf16.mxu0 0
    %327 = vmatpush1.bf16.msra.mxu0 0
    %328 = vmatprep.subr.bf16.mxu0 0
    %329 = vmatpush1.bf16.msra.mxu0 0
    %330 = vmatprep.subr.bf16.mxu0 0
    %331 = vmatpush1.bf16.msra.mxu0 0
    %332 = vmatprep.subr.bf16.mxu0 0
    %333 = vmatpush1.bf16.msra.mxu0 0
    %334 = vmatprep.subr.bf16.mxu0 0
    %335 = vmatpush1.bf16.msra.mxu0 0
    %336 = vmatprep.subr.bf16.mxu0 0
    %337 = vmatpush1.bf16.msra.mxu0 0
    %338 = vmatprep.subr.bf16.mxu0 0
    %339 = vmatpush1.bf16.msra.mxu0 0
    %340 = vmatprep.subr.bf16.mxu0 0
    %341 = vmatpush1.bf16.msra.mxu0 0
    %342 = vmatprep.subr.bf16.mxu0 0
    %343 = vmatpush1.bf16.msra.mxu0 0
    %344 = vmatprep.subr.bf16.mxu0 0
    %345 = vmatpush1.bf16.msra.mxu0 0
    %346 = vmatprep.subr.bf16.mxu0 0
    %347 = vmatpush1.bf16.msra.mxu0 0
    %348 = vmatprep.subr.bf16.mxu0 0
    %349 = vmatpush1.bf16.msra.mxu0 0
    %350 = vmatprep.subr.bf16.mxu0 0
    %351 = vmatpush1.bf16.msra.mxu0 0
    %352 = vmatprep.subr.bf16.mxu0 0
    %353 = vmatpush1.bf16.msra.mxu0 0
    %354 = vmatprep.mubr.bf16.mxu0 0
    %355 = vmatmul.mubr.bf16.gmra.mrb[0].mxu0 %v320
    %v356 = vpop.f32.mrb[0].mxu0
    %v357 = vadd.f32 0.0, %v356
    %v358 = vpop.f32.mrb[0].mxu0
    %v359 = vpop.f32.mrb[0].mxu0
    %v360 = vpop.f32.mrb[0].mxu0
    %361 = vdwg.mxu0
    %v362 = vadd.f32 %v140, %v357
    %v363 = vxor.u32 %v362, 2147483648
    %v364 = vmul.f32 %v363, 1.442695
    %v365 = vpow.pop %v364
    %v366 = vadd.f32 %v365, 1.0
    %v367 = vrcp.pop %v366
    %v368 = vmul.f32 1.0, %v367
    %v369 = vtanh.pop %v362
    %v370 = vmul.f32 %v368, %v308
    %372 = vrot.lane.b32.xlu0 %v369, 64
    %v373 = vpop.permute.xlu0 %372
    %v375 = vmul.f32 %v368, %v373
    %377 = vrot.lane.b32.xlu0 %v375, 32
    %v378 = vpop.permute.xlu0 %377
    %v380 = vadd.f32 %v370, %v378
    %v381 = vtanh.pop %v380
    %383 = vrot.lane.b32.xlu0 %v381, 64
    %v384 = vpop.permute.xlu0 %383
    %v386 = vmul.f32 %v368, %v384
    %v387 = vpack.c.bf16 %v386, %v386
    %389 = vrot.lane.b32.xlu0 %v387, 32
    %v390 = vpop.permute.xlu0 %389
    %v392 = vsel %vm174, %v390, 0
    %394 = vmatprep.subr.bf16.mxu0 0
    %395 = vmatpush1.bf16.msra.mxu0 %v170
    %396 = vmatprep.subr.bf16.mxu0 0
    %397 = vmatpush1.bf16.msra.mxu0 %v171
    %398 = vmatprep.subr.bf16.mxu0 0
    %399 = vmatpush1.bf16.msra.mxu0 0
    %400 = vmatprep.subr.bf16.mxu0 0
    %401 = vmatpush1.bf16.msra.mxu0 0
    %402 = vmatprep.subr.bf16.mxu0 0
    %403 = vmatpush1.bf16.msra.mxu0 0
    %404 = vmatprep.subr.bf16.mxu0 0
    %405 = vmatpush1.bf16.msra.mxu0 0
    %406 = vmatprep.subr.bf16.mxu0 0
    %407 = vmatpush1.bf16.msra.mxu0 0
    %408 = vmatprep.subr.bf16.mxu0 0
    %409 = vmatpush1.bf16.msra.mxu0 0
    %410 = vmatprep.subr.bf16.mxu0 0
    %411 = vmatpush1.bf16.msra.mxu0 0
    %412 = vmatprep.subr.bf16.mxu0 0
    %413 = vmatpush1.bf16.msra.mxu0 0
    %414 = vmatprep.subr.bf16.mxu0 0
    %415 = vmatpush1.bf16.msra.mxu0 0
    %416 = vmatprep.subr.bf16.mxu0 0
    %417 = vmatpush1.bf16.msra.mxu0 0
    %418 = vmatprep.subr.bf16.mxu0 0
    %419 = vmatpush1.bf16.msra.mxu0 0
    %420 = vmatprep.subr.bf16.mxu0 0
    %421 = vmatpush1.bf16.msra.mxu0 0
    %422 = vmatprep.subr.bf16.mxu0 0
    %423 = vmatpush1.bf16.msra.mxu0 0
    %424 = vmatprep.subr.bf16.mxu0 0
    %425 = vmatpush1.bf16.msra.mxu0 0
    %426 = vmatprep.mubr.bf16.mxu0 0
    %427 = vmatmul.mubr.bf16.gmra.mrb[0].mxu0 %v392
    %v428 = vpop.f32.mrb[0].mxu0
    %v429 = vadd.f32 0.0, %v428
    %v430 = vpop.f32.mrb[0].mxu0
    %v431 = vpop.f32.mrb[0].mxu0
    %v432 = vpop.f32.mrb[0].mxu0
    %433 = vdwg.mxu0
    %v434 = vadd.f32 %v143, %v429
    %v435 = vxor.u32 %v434, 2147483648
    %v436 = vmul.f32 %v435, 1.442695
    %v437 = vpow.pop %v436
    %v438 = vadd.f32 %v437, 1.0
    %v439 = vrcp.pop %v438
    %v440 = vmul.f32 1.0, %v439
    %v441 = vtanh.pop %v434
    %v442 = vmul.f32 %v440, %v380
    %444 = vrot.lane.b32.xlu0 %v441, 64
    %v445 = vpop.permute.xlu0 %444
    %v447 = vmul.f32 %v440, %v445
    %449 = vrot.lane.b32.xlu0 %v447, 32
    %v450 = vpop.permute.xlu0 %449
    %v452 = vadd.f32 %v442, %v450
    %v453 = vtanh.pop %v452
    %455 = vrot.lane.b32.xlu0 %v453, 64
    %v456 = vpop.permute.xlu0 %455
    %v458 = vmul.f32 %v440, %v456
    %v459 = vpack.c.bf16 %v458, %v458
    %461 = vrot.lane.b32.xlu0 %v459, 32
    %v462 = vpop.permute.xlu0 %461
    %v464 = vsel %vm174, %v462, 0
    %466 = vmatprep.subr.bf16.mxu0 0
    %467 = vmatpush1.bf16.msra.mxu0 %v170
    %468 = vmatprep.subr.bf16.mxu0 0
    %469 = vmatpush1.bf16.msra.mxu0 %v171
    %470 = vmatprep.subr.bf16.mxu0 0
    %471 = vmatpush1.bf16.msra.mxu0 0
    %472 = vmatprep.subr.bf16.mxu0 0
    %473 = vmatpush1.bf16.msra.mxu0 0
    %474 = vmatprep.subr.bf16.mxu0 0
    %475 = vmatpush1.bf16.msra.mxu0 0
    %476 = vmatprep.subr.bf16.mxu0 0
    %477 = vmatpush1.bf16.msra.mxu0 0
    %478 = vmatprep.subr.bf16.mxu0 0
    %479 = vmatpush1.bf16.msra.mxu0 0
    %480 = vmatprep.subr.bf16.mxu0 0
    %481 = vmatpush1.bf16.msra.mxu0 0
    %482 = vmatprep.subr.bf16.mxu0 0
    %483 = vmatpush1.bf16.msra.mxu0 0
    %484 = vmatprep.subr.bf16.mxu0 0
    %485 = vmatpush1.bf16.msra.mxu0 0
    %486 = vmatprep.subr.bf16.mxu0 0
    %487 = vmatpush1.bf16.msra.mxu0 0
    %488 = vmatprep.subr.bf16.mxu0 0
    %489 = vmatpush1.bf16.msra.mxu0 0
    %490 = vmatprep.subr.bf16.mxu0 0
    %491 = vmatpush1.bf16.msra.mxu0 0
    %492 = vmatprep.subr.bf16.mxu0 0
    %493 = vmatpush1.bf16.msra.mxu0 0
    %494 = vmatprep.subr.bf16.mxu0 0
    %495 = vmatpush1.bf16.msra.mxu0 0
    %496 = vmatprep.subr.bf16.mxu0 0
    %497 = vmatpush1.bf16.msra.mxu0 0
    %498 = vmatprep.mubr.bf16.mxu0 0
    %499 = vmatmul.mubr.bf16.gmra.mrb[0].mxu0 %v464
    %v500 = vpop.f32.mrb[0].mxu0
    %v501 = vadd.f32 0.0, %v500
    %v502 = vpop.f32.mrb[0].mxu0
    %v503 = vpop.f32.mrb[0].mxu0
    %v504 = vpop.f32.mrb[0].mxu0
    %505 = vdwg.mxu0
    %v506 = vadd.f32 %v148, %v501
    %v507 = vxor.u32 %v506, 2147483648
    %v508 = vmul.f32 %v507, 1.442695
    %v509 = vpow.pop %v508
    %v510 = vadd.f32 %v509, 1.0
    %v511 = vrcp.pop %v510
    %v512 = vmul.f32 1.0, %v511
    %v513 = vtanh.pop %v506
    %v514 = vmul.f32 %v512, %v452
    %516 = vrot.lane.b32.xlu0 %v513, 64
    %v517 = vpop.permute.xlu0 %516
    %v519 = vmul.f32 %v512, %v517
    %521 = vrot.lane.b32.xlu0 %v519, 32
    %v522 = vpop.permute.xlu0 %521
    %v524 = vadd.f32 %v514, %v522
    %v525 = vtanh.pop %v524
    %527 = vrot.lane.b32.xlu0 %v525, 64
    %v528 = vpop.permute.xlu0 %527
    %v530 = vmul.f32 %v512, %v528
    %v531 = vpack.c.bf16 %v530, %v530
    %533 = vrot.lane.b32.xlu0 %v531, 32
    %v534 = vpop.permute.xlu0 %533
    %v536 = vsel %vm174, %v534, 0
    %538 = vmatprep.subr.bf16.mxu0 0
    %539 = vmatpush1.bf16.msra.mxu0 %v170
    %540 = vmatprep.subr.bf16.mxu0 0
    %541 = vmatpush1.bf16.msra.mxu0 %v171
    %542 = vmatprep.subr.bf16.mxu0 0
    %543 = vmatpush1.bf16.msra.mxu0 0
    %544 = vmatprep.subr.bf16.mxu0 0
    %545 = vmatpush1.bf16.msra.mxu0 0
    %546 = vmatprep.subr.bf16.mxu0 0
    %547 = vmatpush1.bf16.msra.mxu0 0
    %548 = vmatprep.subr.bf16.mxu0 0
    %549 = vmatpush1.bf16.msra.mxu0 0
    %550 = vmatprep.subr.bf16.mxu0 0
    %551 = vmatpush1.bf16.msra.mxu0 0
    %552 = vmatprep.subr.bf16.mxu0 0
    %553 = vmatpush1.bf16.msra.mxu0 0
    %554 = vmatprep.subr.bf16.mxu0 0
    %555 = vmatpush1.bf16.msra.mxu0 0
    %556 = vmatprep.subr.bf16.mxu0 0
    %557 = vmatpush1.bf16.msra.mxu0 0
    %558 = vmatprep.subr.bf16.mxu0 0
    %559 = vmatpush1.bf16.msra.mxu0 0
    %560 = vmatprep.subr.bf16.mxu0 0
    %561 = vmatpush1.bf16.msra.mxu0 0
    %562 = vmatprep.subr.bf16.mxu0 0
    %563 = vmatpush1.bf16.msra.mxu0 0
    %564 = vmatprep.subr.bf16.mxu0 0
    %565 = vmatpush1.bf16.msra.mxu0 0
    %566 = vmatprep.subr.bf16.mxu0 0
    %567 = vmatpush1.bf16.msra.mxu0 0
    %568 = vmatprep.subr.bf16.mxu0 0
    %569 = vmatpush1.bf16.msra.mxu0 0
    %570 = vmatprep.mubr.bf16.mxu0 0
    %571 = vmatmul.mubr.bf16.gmra.mrb[0].mxu0 %v536
    %v572 = vpop.f32.mrb[0].mxu0
    %v573 = vadd.f32 0.0, %v572
    %v574 = vpop.f32.mrb[0].mxu0
    %v575 = vpop.f32.mrb[0].mxu0
    %v576 = vpop.f32.mrb[0].mxu0
    %577 = vdwg.mxu0
    %v578 = vadd.f32 %v151, %v573
    %v579 = vxor.u32 %v578, 2147483648
    %v580 = vmul.f32 %v579, 1.442695
    %v581 = vpow.pop %v580
    %v582 = vadd.f32 %v581, 1.0
    %v583 = vrcp.pop %v582
    %v584 = vmul.f32 1.0, %v583
    %v585 = vtanh.pop %v578
    %v586 = vmul.f32 %v584, %v524
    %588 = vrot.lane.b32.xlu0 %v585, 64
    %v589 = vpop.permute.xlu0 %588
    %v591 = vmul.f32 %v584, %v589
    %593 = vrot.lane.b32.xlu0 %v591, 32
    %v594 = vpop.permute.xlu0 %593
    %v596 = vadd.f32 %v586, %v594
    %v597 = vtanh.pop %v596
    %599 = vrot.lane.b32.xlu0 %v597, 64
    %v600 = vpop.permute.xlu0 %599
    %v602 = vmul.f32 %v584, %v600
    %v603 = vpack.c.bf16 %v602, %v602
    %605 = vrot.lane.b32.xlu0 %v603, 32
    %v606 = vpop.permute.xlu0 %605
    %v608 = vsel %vm174, %v606, 0
    %610 = vmatprep.subr.bf16.mxu0 0
    %611 = vmatpush1.bf16.msra.mxu0 %v170
    %612 = vmatprep.subr.bf16.mxu0 0
    %613 = vmatpush1.bf16.msra.mxu0 %v171
    %614 = vmatprep.subr.bf16.mxu0 0
    %615 = vmatpush1.bf16.msra.mxu0 0
    %616 = vmatprep.subr.bf16.mxu0 0
    %617 = vmatpush1.bf16.msra.mxu0 0
    %618 = vmatprep.subr.bf16.mxu0 0
    %619 = vmatpush1.bf16.msra.mxu0 0
    %620 = vmatprep.subr.bf16.mxu0 0
    %621 = vmatpush1.bf16.msra.mxu0 0
    %622 = vmatprep.subr.bf16.mxu0 0
    %623 = vmatpush1.bf16.msra.mxu0 0
    %624 = vmatprep.subr.bf16.mxu0 0
    %625 = vmatpush1.bf16.msra.mxu0 0
    %626 = vmatprep.subr.bf16.mxu0 0
    %627 = vmatpush1.bf16.msra.mxu0 0
    %628 = vmatprep.subr.bf16.mxu0 0
    %629 = vmatpush1.bf16.msra.mxu0 0
    %630 = vmatprep.subr.bf16.mxu0 0
    %631 = vmatpush1.bf16.msra.mxu0 0
    %632 = vmatprep.subr.bf16.mxu0 0
    %633 = vmatpush1.bf16.msra.mxu0 0
    %634 = vmatprep.subr.bf16.mxu0 0
    %635 = vmatpush1.bf16.msra.mxu0 0
    %636 = vmatprep.subr.bf16.mxu0 0
    %637 = vmatpush1.bf16.msra.mxu0 0
    %638 = vmatprep.subr.bf16.mxu0 0
    %639 = vmatpush1.bf16.msra.mxu0 0
    %640 = vmatprep.subr.bf16.mxu0 0
    %641 = vmatpush1.bf16.msra.mxu0 0
    %642 = vmatprep.mubr.bf16.mxu0 0
    %643 = vmatmul.mubr.bf16.gmra.mrb[0].mxu0 %v608
    %v644 = vpop.f32.mrb[0].mxu0
    %v645 = vadd.f32 0.0, %v644
    %v646 = vpop.f32.mrb[0].mxu0
    %v647 = vpop.f32.mrb[0].mxu0
    %v648 = vpop.f32.mrb[0].mxu0
    %649 = vdwg.mxu0
    %v650 = vadd.f32 %v156, %v645
    %v651 = vxor.u32 %v650, 2147483648
    %v652 = vmul.f32 %v651, 1.442695
    %v653 = vpow.pop %v652
    %v654 = vadd.f32 %v653, 1.0
    %v655 = vrcp.pop %v654
    %v656 = vmul.f32 1.0, %v655
    %v657 = vtanh.pop %v650
    %v658 = vmul.f32 %v656, %v596
    %660 = vrot.lane.b32.xlu0 %v657, 64
    %v661 = vpop.permute.xlu0 %660
    %v663 = vmul.f32 %v656, %v661
    %665 = vrot.lane.b32.xlu0 %v663, 32
    %v666 = vpop.permute.xlu0 %665
    %v668 = vadd.f32 %v658, %v666
    %v669 = vtanh.pop %v668
    %671 = vrot.lane.b32.xlu0 %v669, 64
    %v672 = vpop.permute.xlu0 %671
    %v674 = vmul.f32 %v656, %v672
    %v675 = vpack.c.bf16 %v674, %v674
    %677 = vrot.lane.b32.xlu0 %v675, 32
    %v678 = vpop.permute.xlu0 %677
    %v680 = vsel %vm174, %v678, 0
    %682 = vmatprep.subr.bf16.mxu0 0
    %683 = vmatpush1.bf16.msra.mxu0 %v170
    %684 = vmatprep.subr.bf16.mxu0 0
    %685 = vmatpush1.bf16.msra.mxu0 %v171
    %686 = vmatprep.subr.bf16.mxu0 0
    %687 = vmatpush1.bf16.msra.mxu0 0
    %688 = vmatprep.subr.bf16.mxu0 0
    %689 = vmatpush1.bf16.msra.mxu0 0
    %690 = vmatprep.subr.bf16.mxu0 0
    %691 = vmatpush1.bf16.msra.mxu0 0
    %692 = vmatprep.subr.bf16.mxu0 0
    %693 = vmatpush1.bf16.msra.mxu0 0
    %694 = vmatprep.subr.bf16.mxu0 0
    %695 = vmatpush1.bf16.msra.mxu0 0
    %696 = vmatprep.subr.bf16.mxu0 0
    %697 = vmatpush1.bf16.msra.mxu0 0
    %698 = vmatprep.subr.bf16.mxu0 0
    %699 = vmatpush1.bf16.msra.mxu0 0
    %700 = vmatprep.subr.bf16.mxu0 0
    %701 = vmatpush1.bf16.msra.mxu0 0
    %702 = vmatprep.subr.bf16.mxu0 0
    %703 = vmatpush1.bf16.msra.mxu0 0
    %704 = vmatprep.subr.bf16.mxu0 0
    %705 = vmatpush1.bf16.msra.mxu0 0
    %706 = vmatprep.subr.bf16.mxu0 0
    %707 = vmatpush1.bf16.msra.mxu0 0
    %708 = vmatprep.subr.bf16.mxu0 0
    %709 = vmatpush1.bf16.msra.mxu0 0
    %710 = vmatprep.subr.bf16.mxu0 0
    %711 = vmatpush1.bf16.msra.mxu0 0
    %712 = vmatprep.subr.bf16.mxu0 0
    %713 = vmatpush1.bf16.msra.mxu0 0
    %714 = vmatprep.mubr.bf16.mxu0 0
    %715 = vmatmul.mubr.bf16.gmra.mrb[0].mxu0 %v680
    %v716 = vpop.f32.mrb[0].mxu0
    %v717 = vadd.f32 0.0, %v716
    %v718 = vpop.f32.mrb[0].mxu0
    %v719 = vpop.f32.mrb[0].mxu0
    %v720 = vpop.f32.mrb[0].mxu0
    %721 = vdwg.mxu0
    %v722 = vadd.f32 %v159, %v717
    %v723 = vxor.u32 %v722, 2147483648
    %v724 = vmul.f32 %v723, 1.442695
    %v725 = vpow.pop %v724
    %v726 = vadd.f32 %v725, 1.0
    %v727 = vrcp.pop %v726
    %v728 = vmul.f32 1.0, %v727
    %v729 = vtanh.pop %v722
    %v730 = vmul.f32 %v728, %v668
    %732 = vrot.lane.b32.xlu0 %v729, 64
    %v733 = vpop.permute.xlu0 %732
    %v735 = vmul.f32 %v728, %v733
    %737 = vrot.lane.b32.xlu0 %v735, 32
    %v738 = vpop.permute.xlu0 %737
    %v740 = vadd.f32 %v730, %v738
    %v741 = vtanh.pop %v740
    %743 = vrot.lane.b32.xlu0 %v741, 64
    %v744 = vpop.permute.xlu0 %743
    %v746 = vmul.f32 %v728, %v744
    %v747 = vpack.c.bf16 %v314, %v242
    %v748 = vpack.c.bf16 %v458, %v386
    %v749 = vpack.c.bf16 %v602, %v530
    %v750 = vpack.c.bf16 %v746, %v674
    %755 = vrot.lane.b32.xlu0 %v747, 32
    %v756 = vpop.permute.xlu0 %755
    %757 = vrot.lane.b32.xlu0 %v748, 32
    %v758 = vpop.permute.xlu0 %757
    %759 = vrot.lane.b32.xlu0 %v749, 32
    %v760 = vpop.permute.xlu0 %759
    %761 = vrot.lane.b32.xlu0 %v750, 32
    %v762 = vpop.permute.xlu0 %761
    %v767 = vunpack.c.l.b16 %v35
    %v768 = vunpack.c.l.b16 %v36
    %v769 = vunpack.c.l.b16 %v37
    %v770 = vunpack.c.l.b16 %v38
    %v771 = vpack.c.b16 %v768, %v767
    %v772 = vpack.c.b16 %v770, %v769
    %v776 = vsel %vm174, %v756, 0
    %v779 = vsel %vm174, %v758, 0
    %v782 = vsel %vm174, %v760, 0
    %v785 = vsel %vm174, %v762, 0
    %787 = vmatprep.subr.bf16.mxu0 0
    %788 = vmatpush1.bf16.msra.mxu0 %v771
    %789 = vmatprep.subr.bf16.mxu0 0
    %790 = vmatpush1.bf16.msra.mxu0 %v772
    %791 = vmatprep.subr.bf16.mxu0 0
    %792 = vmatpush1.bf16.msra.mxu0 0
    %793 = vmatprep.subr.bf16.mxu0 0
    %794 = vmatpush1.bf16.msra.mxu0 0
    %795 = vmatprep.subr.bf16.mxu0 0
    %796 = vmatpush1.bf16.msra.mxu0 0
    %797 = vmatprep.subr.bf16.mxu0 0
    %798 = vmatpush1.bf16.msra.mxu0 0
    %799 = vmatprep.subr.bf16.mxu0 0
    %800 = vmatpush1.bf16.msra.mxu0 0
    %801 = vmatprep.subr.bf16.mxu0 0
    %802 = vmatpush1.bf16.msra.mxu0 0
    %803 = vmatprep.subr.bf16.mxu0 0
    %804 = vmatpush1.bf16.msra.mxu0 0
    %805 = vmatprep.subr.bf16.mxu0 0
    %806 = vmatpush1.bf16.msra.mxu0 0
    %807 = vmatprep.subr.bf16.mxu0 0
    %808 = vmatpush1.bf16.msra.mxu0 0
    %809 = vmatprep.subr.bf16.mxu0 0
    %810 = vmatpush1.bf16.msra.mxu0 0
    %811 = vmatprep.subr.bf16.mxu0 0
    %812 = vmatpush1.bf16.msra.mxu0 0
    %813 = vmatprep.subr.bf16.mxu0 0
    %814 = vmatpush1.bf16.msra.mxu0 0
    %815 = vmatprep.subr.bf16.mxu0 0
    %816 = vmatpush1.bf16.msra.mxu0 0
    %817 = vmatprep.subr.bf16.mxu0 0
    %818 = vmatpush1.bf16.msra.mxu0 0
    %819 = vmatprep.mubr.bf16.mxu0 0
    %820 = vmatmul.mubr.bf16.gmra.mrb[0].mxu0 %v776
    %v821 = vpop.f32.mrb[0].mxu0
    %v822 = vadd.f32 0.0, %v821
    %v823 = vpop.f32.mrb[0].mxu0
    %v824 = vpop.f32.mrb[0].mxu0
    %v825 = vadd.f32 0.0, %v824
    %v826 = vpop.f32.mrb[0].mxu0
    %827 = vmatprep.mubr.bf16.mxu0 0
    %828 = vmatmul.mubr.bf16.gmra.mrb[0].mxu0 %v779
    %v829 = vpop.f32.mrb[0].mxu0
    %v830 = vadd.f32 0.0, %v829
    %v831 = vpop.f32.mrb[0].mxu0
    %v832 = vpop.f32.mrb[0].mxu0
    %v833 = vadd.f32 0.0, %v832
    %v834 = vpop.f32.mrb[0].mxu0
    %835 = vmatprep.mubr.bf16.mxu0 0
    %836 = vmatmul.mubr.bf16.gmra.mrb[0].mxu0 %v782
    %v837 = vpop.f32.mrb[0].mxu0
    %v838 = vadd.f32 0.0, %v837
    %v839 = vpop.f32.mrb[0].mxu0
    %v840 = vpop.f32.mrb[0].mxu0
    %v841 = vadd.f32 0.0, %v840
    %v842 = vpop.f32.mrb[0].mxu0
    %843 = vmatprep.mubr.bf16.mxu0 0
    %844 = vmatmul.mubr.bf16.gmra.mrb[0].mxu0 %v785
    %v845 = vpop.f32.mrb[0].mxu0
    %v846 = vadd.f32 0.0, %v845
    %v847 = vpop.f32.mrb[0].mxu0
    %v848 = vpop.f32.mrb[0].mxu0
    %v849 = vadd.f32 0.0, %v848
    %v850 = vpop.f32.mrb[0].mxu0
    %851 = vdwg.mxu0
    %853 = vrot.lane.b32.xlu0 %v849, 96
    %v854 = vpop.permute.xlu0 %853
    %v856 = vadd.f32 %v822, %v854
    %v857 = vtanh.pop %v856
    %v858 = vlaneseq
    %v859 = vshrl.u32 %v858, 7
    %v860 = vsub.s32 0, %v859
    %v861 = vrot.slane %v44, %v860
    %v862 = vmul.f32 %v857, %v861
    %v863 = vsel %vm174, %v862, 0.0
    %864 = vadd.xlane.f32.xlu0 %v863
    %v865 = vpop.xlane.xlu0 %864
    %v866 = vadd.f32 %v825, %v854
    %v867 = vtanh.pop %v866
    %v868 = vmul.f32 %v867, %v861
    %v869 = vsel %vm174, %v868, 0.0
    %870 = vadd.xlane.f32.xlu0 %v869
    %v871 = vpop.xlane.xlu0 %870
    %v872 = vadd.f32 %v830, %v854
    %v873 = vtanh.pop %v872
    %v874 = vmul.f32 %v873, %v861
    %v875 = vsel %vm174, %v874, 0.0
    %876 = vadd.xlane.f32.xlu0 %v875
    %v877 = vpop.xlane.xlu0 %876
    %v878 = vadd.f32 %v833, %v854
    %v879 = vtanh.pop %v878
    %v880 = vmul.f32 %v879, %v861
    %v881 = vsel %vm174, %v880, 0.0
    %882 = vadd.xlane.f32.xlu0 %v881
    %v883 = vpop.xlane.xlu0 %882
    %v884 = vadd.f32 %v838, %v854
    %v885 = vtanh.pop %v884
    %v886 = vmul.f32 %v885, %v861
    %v887 = vsel %vm174, %v886, 0.0
    %888 = vadd.xlane.f32.xlu0 %v887
    %v889 = vpop.xlane.xlu0 %888
    %v890 = vadd.f32 %v841, %v854
    %v891 = vtanh.pop %v890
    %v892 = vmul.f32 %v891, %v861
    %v893 = vsel %vm174, %v892, 0.0
    %894 = vadd.xlane.f32.xlu0 %v893
    %v895 = vpop.xlane.xlu0 %894
    %v896 = vadd.f32 %v846, %v854
    %v897 = vtanh.pop %v896
    %v898 = vmul.f32 %v897, %v861
    %v899 = vsel %vm174, %v898, 0.0
    %900 = vadd.xlane.f32.xlu0 %v899
    %v901 = vpop.xlane.xlu0 %900
    %v902 = vadd.f32 %v849, %v854
    %v903 = vtanh.pop %v902
    %v904 = vmul.f32 %v903, %v861
    %v905 = vsel %vm174, %v904, 0.0
    %906 = vadd.xlane.f32.xlu0 %v905
    %v907 = vpop.xlane.xlu0 %906
    %vm908 = vcmask 7168
    %v909 = vsel %vm908, %v865, %v871
    %vm910 = vcmask 15360
    %v911 = vsel %vm910, %v909, %v877
    %vm912 = vcmask 23552
    %v913 = vsel %vm912, %v911, %v883
    %vm914 = vcmask 31744
    %v915 = vsel %vm914, %v913, %v889
    %vm916 = vcmask 39936
    %v917 = vsel %vm916, %v915, %v895
    %vm918 = vcmask 48128
    %v919 = vsel %vm918, %v917, %v901
    %vm920 = vcmask 56320
    %v921 = vsel %vm920, %v919, %v907
    %v922 = vsel %vm80, %v921, -inf
    %923 = vmax.xlane.f32.xlu0 %v922
    %v924 = vpop.xlane.xlu0 %923
    %v925 = vsub.f32 %v921, %v924
    %v926 = vmul.f32 %v925, 1.442695
    %v927 = vpow.pop %v926
    %v928 = vsel %vm80, %v927, 0.0
    %929 = vadd.xlane.f32.xlu0 %v928
    %v930 = vpop.xlane.xlu0 %929
    %v931 = vrcp.pop %v930
    %v932 = vmul.f32 %v927, %v931
    %934 = vset.pattern.permute.xlu0 0
    %935 = vperm.xlu0 %934, %v932
    %v936 = vpop.permute.xlu0 %935
    %v938 = vmul.f32 %v936, %v242
    %v939 = vadd.f32 %v938, 0.0
    %940 = vset.pattern.permute.xlu0 1
    %941 = vperm.xlu0 %940, %v932
    %v942 = vpop.permute.xlu0 %941
    %v944 = vmul.f32 %v942, %v314
    %v945 = vadd.f32 %v939, %v944
    %946 = vset.pattern.permute.xlu0 2
    %947 = vperm.xlu0 %946, %v932
    %v948 = vpop.permute.xlu0 %947
    %v950 = vmul.f32 %v948, %v386
    %v951 = vadd.f32 %v945, %v950
    %952 = vset.pattern.permute.xlu0 3
    %953 = vperm.xlu0 %952, %v932
    %v954 = vpop.permute.xlu0 %953
    %v956 = vmul.f32 %v954, %v458
    %v957 = vadd.f32 %v951, %v956
    %958 = vset.pattern.permute.xlu0 4
    %959 = vperm.xlu0 %958, %v932
    %v960 = vpop.permute.xlu0 %959
    %v962 = vmul.f32 %v960, %v530
    %v963 = vadd.f32 %v957, %v962
    %964 = vset.pattern.permute.xlu0 5
    %965 = vperm.xlu0 %964, %v932
    %v966 = vpop.permute.xlu0 %965
    %v968 = vmul.f32 %v966, %v602
    %v969 = vadd.f32 %v963, %v968
    %970 = vset.pattern.permute.xlu0 6
    %971 = vperm.xlu0 %970, %v932
    %v972 = vpop.permute.xlu0 %971
    %v974 = vmul.f32 %v972, %v674
    %v975 = vadd.f32 %v969, %v974
    %976 = vset.pattern.permute.xlu0 7
    %977 = vperm.xlu0 %976, %v932
    %v978 = vpop.permute.xlu0 %977
    %v980 = vmul.f32 %v978, %v746
    %v981 = vadd.f32 %v975, %v980
    %v982 = vpack.c.bf16 %v981, %v981
    %v983 = vlaneseq
    %v984 = vshrl.u32 %v983, 7
    %v985 = vsub.s32 0, %v984
    %v986 = vrot.slane %v45, %v985
    %988 = vrot.lane.b32.xlu0 %v982, 32
    %v989 = vpop.permute.xlu0 %988
    %v994 = vunpack.c.l.b16 %v39
    %v995 = vunpack.c.l.b16 %v40
    %v996 = vunpack.c.l.b16 %v41
    %v997 = vunpack.c.l.b16 %v42
    %v998 = vpack.c.b16 %v995, %v994
    %v999 = vpack.c.b16 %v997, %v996
    %v1003 = vsel %vm174, %v989, 0
    %1005 = vmatprep.subr.bf16.mxu0 0
    %1006 = vmatpush1.bf16.msra.mxu0 %v998
    %1007 = vmatprep.subr.bf16.mxu0 0
    %1008 = vmatpush1.bf16.msra.mxu0 %v999
    %1009 = vmatprep.subr.bf16.mxu0 0
    %1010 = vmatpush1.bf16.msra.mxu0 0
    %1011 = vmatprep.subr.bf16.mxu0 0
    %1012 = vmatpush1.bf16.msra.mxu0 0
    %1013 = vmatprep.subr.bf16.mxu0 0
    %1014 = vmatpush1.bf16.msra.mxu0 0
    %1015 = vmatprep.subr.bf16.mxu0 0
    %1016 = vmatpush1.bf16.msra.mxu0 0
    %1017 = vmatprep.subr.bf16.mxu0 0
    %1018 = vmatpush1.bf16.msra.mxu0 0
    %1019 = vmatprep.subr.bf16.mxu0 0
    %1020 = vmatpush1.bf16.msra.mxu0 0
    %1021 = vmatprep.subr.bf16.mxu0 0
    %1022 = vmatpush1.bf16.msra.mxu0 0
    %1023 = vmatprep.subr.bf16.mxu0 0
    %1024 = vmatpush1.bf16.msra.mxu0 0
    %1025 = vmatprep.subr.bf16.mxu0 0
    %1026 = vmatpush1.bf16.msra.mxu0 0
    %1027 = vmatprep.subr.bf16.mxu0 0
    %1028 = vmatpush1.bf16.msra.mxu0 0
    %1029 = vmatprep.subr.bf16.mxu0 0
    %1030 = vmatpush1.bf16.msra.mxu0 0
    %1031 = vmatprep.subr.bf16.mxu0 0
    %1032 = vmatpush1.bf16.msra.mxu0 0
    %1033 = vmatprep.subr.bf16.mxu0 0
    %1034 = vmatpush1.bf16.msra.mxu0 0
    %1035 = vmatprep.subr.bf16.mxu0 0
    %1036 = vmatpush1.bf16.msra.mxu0 0
    %1037 = vmatprep.mubr.bf16.mxu0 0
    %1038 = vmatmul.mubr.bf16.gmra.mrb[0].mxu0 %v1003
    %v1039 = vpop.f32.mrb[0].mxu0
    %v1040 = vadd.f32 %v986, %v1039
    %v1041 = vpop.f32.mrb[0].mxu0
    %v1042 = vpop.f32.mrb[0].mxu0
    %v1043 = vpop.f32.mrb[0].mxu0
    %1044 = vdwg.mxu0
    %v1045 = vmax.f32 %v1040, 0.0
    %v1046 = vlaneseq
    %v1047 = vshrl.u32 %v1046, 7
    %v1048 = vsub.s32 0, %v1047
    %v1049 = vrot.slane %v46, %v1048
    %v1050 = vmul.f32 %v1045, %v1049
    %v1051 = vsel %vm174, %v1050, 0.0
    %1052 = vadd.xlane.f32.xlu0 %v1051
    %v1053 = vpop.xlane.xlu0 %1052
    %v1054 = vlaneseq
    %v1055 = vshrl.u32 %v1054, 7
    %v1056 = vsub.s32 0, %v1055
    %v1057 = vrot.slane %v47, %v1056
    %v1058 = vadd.f32 %v1053, %v1057
    %1060 = vset.pattern.permute.xlu0 0
    %1061 = vperm.xlu0 %1060, %v1058
    %v1062 = vpop.permute.xlu0 %1061
    %1064 = vst [vmem:[#allocation5] sm:$0xff] %v1062
    // Predicated region
    $region18: #{tpu_custom_call.1} parent=1 // pred_check
      _
    $region19: #{tpu_custom_call.1} parent=1 // pred_check_branch
      %1066 = sbr.rel (0) target = $region21
    $region20: #{tpu_custom_call.1} parent=1 // pred_region
      %s1068 = ssub.s32 128, 128
      %1069 = vsyncadd [#allocation4], %s1068
      %s1071 = sshll.u32 [#allocation5], 4
      %s1072 = int_to_ptr.vmem [resolvable:$true] %s1071
      %1074 = dma.vmem_to_hbm [thread:$0]  %s1072, 128, %s3, [#allocation4]
    $region21: #{tpu_custom_call.1} parent=1 // pred_fallthru
      _
    // Predicated region
    $region22: #{tpu_custom_call.1} parent=1 // pred_check
      _
    $region23: #{tpu_custom_call.1} parent=1 // pred_check_branch
      %1076 = sbr.rel (0) target = $region25
    $region24: #{tpu_custom_call.1} parent=1 // pred_region
      %1077 = dma.done [#allocation4], 128
    $region25: #{tpu_custom_call.1} parent=1 // pred_fallthru
      _
    %1078 = vsyncpa [#allocation3], 1
    %1079 = vsyncpa [#allocation4], 1

</llo_original>
